<compile_context>
chip_gen: v5e
topology: v5e:2x2
jax: 0.10.0
libtpu: 0.0.40
codegen_flags: <defaults>
</compile_context>

<pallas_src>
import math

import jax
import jax.numpy as jnp
from jax.experimental import pallas as pl
from jax.experimental.pallas import tpu as pltpu

# ----------------------------- config (small, synthetic) ---------------------
BATCH = 2
IN_CH = 4          # input_channels
SEQ = 8            # seq_length
D_MODEL = 32
NHEAD = 4
NUM_LAYERS = 2
NUM_CLASSES = 5
D_FF = 4 * D_MODEL
HEAD_DIM = D_MODEL // NHEAD
LN_EPS = 1e-5
BS = BATCH * SEQ
NEG_INF = -1e30
# decode=False, masking=False, clf_pool=None -> nn.Flatten + Linear(S*D, classes)


# ----------------------------- fused Pallas kernel ----------------------------
def _fused_transformer_kernel(
        x_ref, in_w_ref, pe_b_ref, mask_ref,
        w_qkv_ref, b_qkv_ref, w_o_ref, b_o_ref,
        ln1_g_ref, ln1_b_ref, w1_ref, b1_ref, w2_ref, b2_ref,
        ln2_g_ref, ln2_b_ref, out_w_ref, out_b_ref,
        o_ref):
    f32 = jnp.float32
    scale = 1.0 / math.sqrt(HEAD_DIM)

    def layer_norm(z, gamma, beta):
        mean = jnp.mean(z, axis=-1, keepdims=True)
        zc = z - mean
        var = jnp.mean(zc * zc, axis=-1, keepdims=True)
        return zc * jax.lax.rsqrt(var + LN_EPS) * gamma + beta

    # ---- input_fc + (bias + positional encoding) folded into pe_b ----
    h = jnp.dot(x_ref[...], in_w_ref[...], preferred_element_type=f32)
    h = h + pe_b_ref[...]                                         # (BS, D)

    # Block-diagonal additive mask: 0 within a batch element, -1e30 across.
    mask = mask_ref[...]                                          # (BS, BS)

    # Small stacked params loaded once (stay in vregs / VMEM).
    b_qkv_all = b_qkv_ref[...]                                    # (L, 3D)
    b_o_all = b_o_ref[...]                                        # (L, D)
    b1_all = b1_ref[...]                                          # (L, D_FF)
    b2_all = b2_ref[...]                                          # (L, D)
    ln1_g_all, ln1_b_all = ln1_g_ref[...], ln1_b_ref[...]
    ln2_g_all, ln2_b_all = ln2_g_ref[...], ln2_b_ref[...]

    for l in range(NUM_LAYERS):
        # ---- fused QKV projection: one (BS,D)@(D,3D) MXU pass ----
        qkv = jnp.dot(h, w_qkv_ref[l], preferred_element_type=f32)
        qkv = qkv + b_qkv_all[l:l + 1]                            # (BS, 3D)

        # ---- multi-head self-attention, all batches at once via block-diag
        #      mask; output projection folded per head (no lane concat). ----
        w_o_l = w_o_ref[l]                                        # (D, D)
        attn = jnp.zeros((BS, D_MODEL), f32)
        for hh in range(NHEAD):
            lo = hh * HEAD_DIM
            qh = qkv[:, lo:lo + HEAD_DIM]                         # (BS, dh)
            kh = qkv[:, D_MODEL + lo:D_MODEL + lo + HEAD_DIM]     # (BS, dh)
            vh = qkv[:, 2 * D_MODEL + lo:2 * D_MODEL + lo + HEAD_DIM]
            # scores = qh @ kh^T without an explicit transpose
            sc = jax.lax.dot_general(qh, kh, (((1,), (1,)), ((), ())),
                                     preferred_element_type=f32)
            sc = sc * scale + mask                                # kill cross-batch
            sc = sc - jnp.max(sc, axis=-1, keepdims=True)
            p = jnp.exp(sc)
            p = p * pl.reciprocal(jnp.sum(p, axis=-1, keepdims=True),
                                  approx=True)                    # EUP slot
            oh = jnp.dot(p, vh, preferred_element_type=f32)       # (BS, dh)
            attn = attn + jnp.dot(oh, w_o_l[lo:lo + HEAD_DIM, :],
                                  preferred_element_type=f32)     # (BS, D)
        attn = attn + b_o_all[l:l + 1]

        # ---- residual + LayerNorm 1 (post-LN) ----
        h = layer_norm(h + attn, ln1_g_all[l:l + 1], ln1_b_all[l:l + 1])

        # ---- feed-forward (ReLU), D_FF = 128 is lane-dense ----
        ff = jnp.dot(h, w1_ref[l], preferred_element_type=f32) + b1_all[l:l + 1]
        ff = jnp.maximum(ff, 0.0)
        ff = jnp.dot(ff, w2_ref[l], preferred_element_type=f32) + b2_all[l:l + 1]

        # ---- residual + LayerNorm 2 ----
        h = layer_norm(h + ff, ln2_g_all[l:l + 1], ln2_b_all[l:l + 1])

    # ---- Flatten + output_fc:  logits[b] = bias + sum_s h[b,s] @ W[s*D:(s+1)*D]
    # (mathematically identical to reshape(S*D) @ W; avoids relayout reshape) --
    out_w = out_w_ref[...]                                        # (S*D, NC)
    out_b = out_b_ref[...]                                        # (1, NC)
    for b in range(BATCH):
        row = out_b
        for s in range(SEQ):
            r = b * SEQ + s
            row = row + jnp.dot(h[r:r + 1, :],
                                out_w[s * D_MODEL:(s + 1) * D_MODEL, :],
                                preferred_element_type=f32)
        o_ref[b:b + 1, :] = row


def fused_transformer(x_bsc, params):
    """x_bsc: (B, S, C) float32. Returns (B, NUM_CLASSES)."""
    B, S, C = x_bsc.shape
    assert (B, S, C) == (BATCH, SEQ, IN_CH)

    # Host-side (jit-fused, tiny) prep: merge (B,S)->B*S rows, fold input bias
    # into the positional-encoding addend, build block-diagonal attention mask.
    x2d = x_bsc.reshape(B * S, C)
    pe_b = jnp.tile(params["pe"] + params["in_b"], (B, 1))        # (B*S, D)
    bids = jnp.repeat(jnp.arange(B), S)
    mask = jnp.where(bids[:, None] == bids[None, :],
                     0.0, NEG_INF).astype(jnp.float32)            # (B*S, B*S)

    def full(shape):
        if len(shape) == 2:
            return pl.BlockSpec(shape, lambda i: (0, 0))
        return pl.BlockSpec(shape, lambda i: (0, 0, 0))

    out = pl.pallas_call(
        _fused_transformer_kernel,
        out_shape=jax.ShapeDtypeStruct((B, NUM_CLASSES), jnp.float32),
        grid=(1,),
        in_specs=[
            full((B * S, IN_CH)),                                  # x
            full((IN_CH, D_MODEL)),                                # in_w
            full((B * S, D_MODEL)),                                # pe + in_b
            full((B * S, B * S)),                                  # block-diag mask
            full((NUM_LAYERS, D_MODEL, 3 * D_MODEL)),              # w_qkv
            full((NUM_LAYERS, 3 * D_MODEL)),                       # b_qkv
            full((NUM_LAYERS, D_MODEL, D_MODEL)),                  # w_o
            full((NUM_LAYERS, D_MODEL)),                           # b_o
            full((NUM_LAYERS, D_MODEL)),                           # ln1_g
            full((NUM_LAYERS, D_MODEL)),                           # ln1_b
            full((NUM_LAYERS, D_MODEL, D_FF)),                     # w1
            full((NUM_LAYERS, D_FF)),                              # b1
            full((NUM_LAYERS, D_FF, D_MODEL)),                     # w2
            full((NUM_LAYERS, D_MODEL)),                           # b2
            full((NUM_LAYERS, D_MODEL)),                           # ln2_g
            full((NUM_LAYERS, D_MODEL)),                           # ln2_b
            full((SEQ * D_MODEL, NUM_CLASSES)),                    # out_w
            full((1, NUM_CLASSES)),                                # out_b
        ],
        out_specs=pl.BlockSpec((B, NUM_CLASSES), lambda i: (0, 0)),
        compiler_params=pltpu.CompilerParams(
            dimension_semantics=("arbitrary",)),
    )(x2d, params["in_w"], pe_b, mask,
      params["w_qkv"], params["b_qkv"], params["w_o"], params["b_o"],
      params["ln1_g"], params["ln1_b"],
      params["w1"], params["b1"], params["w2"], params["b2"],
      params["ln2_g"], params["ln2_b"],
      params["out_w"], params["out_b"])
    return out


# ----------------------------- params / model glue ----------------------------
def sinusoidal_pe(seq_len, d_model):
    position = jnp.arange(seq_len, dtype=jnp.float32)[:, None]
    div_term = jnp.exp(jnp.arange(0, d_model, 2, dtype=jnp.float32)
                       * (-math.log(10000.0) / d_model))
    pe = jnp.zeros((seq_len, d_model), jnp.float32)
    pe = pe.at[:, 0::2].set(jnp.sin(position * div_term))
    pe = pe.at[:, 1::2].set(jnp.cos(position * div_term))
    return pe


def init_params(key):
    keys = iter(jax.random.split(key, 8 + 8 * NUM_LAYERS))

    def uniform(shape, fan_in):
        bound = 1.0 / math.sqrt(fan_in)
        return jax.random.uniform(next(keys), shape, jnp.float32, -bound, bound)

    params = {}
    params["in_w"] = uniform((IN_CH, D_MODEL), IN_CH)
    params["in_b"] = uniform((1, D_MODEL), IN_CH)          # pre-shaped (1, D)
    params["pe"] = sinusoidal_pe(SEQ, D_MODEL)

    w_qkv, b_qkv, w_o, b_o, w1, b1, w2, b2 = ([] for _ in range(8))
    for _ in range(NUM_LAYERS):
        w_qkv.append(uniform((D_MODEL, 3 * D_MODEL), D_MODEL))   # fused QKV weight
        b_qkv.append(uniform((3 * D_MODEL,), D_MODEL))
        w_o.append(uniform((D_MODEL, D_MODEL), D_MODEL))
        b_o.append(uniform((D_MODEL,), D_MODEL))
        w1.append(uniform((D_MODEL, D_FF), D_MODEL))
        b1.append(uniform((D_FF,), D_MODEL))
        w2.append(uniform((D_FF, D_MODEL), D_FF))
        b2.append(uniform((D_MODEL,), D_FF))

    params["w_qkv"] = jnp.stack(w_qkv)
    params["b_qkv"] = jnp.stack(b_qkv)
    params["w_o"] = jnp.stack(w_o)
    params["b_o"] = jnp.stack(b_o)
    params["w1"] = jnp.stack(w1)
    params["b1"] = jnp.stack(b1)
    params["w2"] = jnp.stack(w2)
    params["b2"] = jnp.stack(b2)
    params["ln1_g"] = jnp.ones((NUM_LAYERS, D_MODEL), jnp.float32)
    params["ln1_b"] = jnp.zeros((NUM_LAYERS, D_MODEL), jnp.float32)
    params["ln2_g"] = jnp.ones((NUM_LAYERS, D_MODEL), jnp.float32)
    params["ln2_b"] = jnp.zeros((NUM_LAYERS, D_MODEL), jnp.float32)

    params["out_w"] = uniform((SEQ * D_MODEL, NUM_CLASSES), SEQ * D_MODEL)
    params["out_b"] = uniform((1, NUM_CLASSES), SEQ * D_MODEL)
    return params


@jax.jit
def transformer_forward(x, params):
    # x: (B, C, S) as in PyTorch; x.transpose(1, 2) -> (B, S, C)
    x_bsc = jnp.transpose(x, (0, 2, 1))
    out = fused_transformer(x_bsc, params)      # (B, NUM_CLASSES)
    return jnp.squeeze(out)                     # matches `return x.squeeze()`


if __name__ == "__main__":
    key = jax.random.PRNGKey(0)
    kx, kp = jax.random.split(key)
    x = jax.random.normal(kx, (BATCH, IN_CH, SEQ), jnp.float32)
    params = init_params(kp)

    out = transformer_forward(x, params)
    out = jax.block_until_ready(out)

    assert out.shape == (BATCH, NUM_CLASSES), out.shape
    assert bool(jnp.all(jnp.isfinite(out)))
    print("KERNEL_OK")
</pallas_src>

<mosaic_0001>
module attributes {stable_mosaic.version = 11 : i64} {
  func.func @_fused_transformer_kernel(%arg0: i32, %arg1: memref<16x4xf32, #tpu.memory_space<vmem>>, %arg2: memref<4x32xf32, #tpu.memory_space<vmem>>, %arg3: memref<16x32xf32, #tpu.memory_space<vmem>>, %arg4: memref<16x16xf32, #tpu.memory_space<vmem>>, %arg5: memref<2x32x96xf32, #tpu.memory_space<vmem>>, %arg6: memref<2x96xf32, #tpu.memory_space<vmem>>, %arg7: memref<2x32x32xf32, #tpu.memory_space<vmem>>, %arg8: memref<2x32xf32, #tpu.memory_space<vmem>>, %arg9: memref<2x32xf32, #tpu.memory_space<vmem>>, %arg10: memref<2x32xf32, #tpu.memory_space<vmem>>, %arg11: memref<2x32x128xf32, #tpu.memory_space<vmem>>, %arg12: memref<2x128xf32, #tpu.memory_space<vmem>>, %arg13: memref<2x128x32xf32, #tpu.memory_space<vmem>>, %arg14: memref<2x32xf32, #tpu.memory_space<vmem>>, %arg15: memref<2x32xf32, #tpu.memory_space<vmem>>, %arg16: memref<2x32xf32, #tpu.memory_space<vmem>>, %arg17: memref<256x5xf32, #tpu.memory_space<vmem>>, %arg18: memref<1x5xf32, #tpu.memory_space<vmem>>, %arg19: memref<2x5xf32, #tpu.memory_space<vmem>>) attributes {dimension_semantics = [#tpu.dimension_semantics<arbitrary>], iteration_bounds = array<i64: 1>, scalar_prefetch = 0 : i64, scratch_operands = 0 : i64, tpu.core_type = #tpu.core_type<tc>, window_params = [{pipeline_mode = #tpu.pipeline_mode<synchronous>, transform_indices = @transform_0, window_bounds = array<i64: 16, 4>}, {pipeline_mode = #tpu.pipeline_mode<synchronous>, transform_indices = @transform_1, window_bounds = array<i64: 4, 32>}, {pipeline_mode = #tpu.pipeline_mode<synchronous>, transform_indices = @transform_2, window_bounds = array<i64: 16, 32>}, {pipeline_mode = #tpu.pipeline_mode<synchronous>, transform_indices = @transform_3, window_bounds = array<i64: 16, 16>}, {pipeline_mode = #tpu.pipeline_mode<synchronous>, transform_indices = @transform_4, window_bounds = array<i64: 2, 32, 96>}, {pipeline_mode = #tpu.pipeline_mode<synchronous>, transform_indices = @transform_5, window_bounds = array<i64: 2, 96>}, {pipeline_mode = #tpu.pipeline_mode<synchronous>, transform_indices = @transform_6, window_bounds = array<i64: 2, 32, 32>}, {pipeline_mode = #tpu.pipeline_mode<synchronous>, transform_indices = @transform_7, window_bounds = array<i64: 2, 32>}, {pipeline_mode = #tpu.pipeline_mode<synchronous>, transform_indices = @transform_8, window_bounds = array<i64: 2, 32>}, {pipeline_mode = #tpu.pipeline_mode<synchronous>, transform_indices = @transform_9, window_bounds = array<i64: 2, 32>}, {pipeline_mode = #tpu.pipeline_mode<synchronous>, transform_indices = @transform_10, window_bounds = array<i64: 2, 32, 128>}, {pipeline_mode = #tpu.pipeline_mode<synchronous>, transform_indices = @transform_11, window_bounds = array<i64: 2, 128>}, {pipeline_mode = #tpu.pipeline_mode<synchronous>, transform_indices = @transform_12, window_bounds = array<i64: 2, 128, 32>}, {pipeline_mode = #tpu.pipeline_mode<synchronous>, transform_indices = @transform_13, window_bounds = array<i64: 2, 32>}, {pipeline_mode = #tpu.pipeline_mode<synchronous>, transform_indices = @transform_14, window_bounds = array<i64: 2, 32>}, {pipeline_mode = #tpu.pipeline_mode<synchronous>, transform_indices = @transform_15, window_bounds = array<i64: 2, 32>}, {pipeline_mode = #tpu.pipeline_mode<synchronous>, transform_indices = @transform_16, window_bounds = array<i64: 256, 5>}, {pipeline_mode = #tpu.pipeline_mode<synchronous>, transform_indices = @transform_17, window_bounds = array<i64: 1, 5>}, {pipeline_mode = #tpu.pipeline_mode<synchronous>, transform_indices = @transform_18, window_bounds = array<i64: 2, 5>}]} {
    %c0 = arith.constant 0 : index
    %c0_0 = arith.constant 0 : index
    %0 = vector.load %arg1[%c0, %c0_0] : memref<16x4xf32, #tpu.memory_space<vmem>>, vector<16x4xf32>
    %c0_1 = arith.constant 0 : index
    %c0_2 = arith.constant 0 : index
    %1 = vector.load %arg2[%c0_1, %c0_2] : memref<4x32xf32, #tpu.memory_space<vmem>>, vector<4x32xf32>
    %cst = arith.constant dense<0.000000e+00> : vector<16x32xf32>
    %2 = tpu.matmul %0, %1, %cst {dimension_numbers = #tpu.dot_dimension_numbers<[1], [0], [0], [1], [0, 0, 1, 1], [], []>} : vector<16x4xf32>, vector<4x32xf32>, vector<16x32xf32> -> vector<16x32xf32>
    %c0_3 = arith.constant 0 : index
    %c0_4 = arith.constant 0 : index
    %3 = vector.load %arg3[%c0_3, %c0_4] : memref<16x32xf32, #tpu.memory_space<vmem>>, vector<16x32xf32>
    %4 = arith.addf %2, %3 : vector<16x32xf32>
    %c0_5 = arith.constant 0 : index
    %c0_6 = arith.constant 0 : index
    %5 = vector.load %arg4[%c0_5, %c0_6] : memref<16x16xf32, #tpu.memory_space<vmem>>, vector<16x16xf32>
    %c0_7 = arith.constant 0 : index
    %c0_8 = arith.constant 0 : index
    %6 = vector.load %arg6[%c0_7, %c0_8] : memref<2x96xf32, #tpu.memory_space<vmem>>, vector<2x96xf32>
    %c0_9 = arith.constant 0 : index
    %c0_10 = arith.constant 0 : index
    %7 = vector.load %arg8[%c0_9, %c0_10] : memref<2x32xf32, #tpu.memory_space<vmem>>, vector<2x32xf32>
    %c0_11 = arith.constant 0 : index
    %c0_12 = arith.constant 0 : index
    %8 = vector.load %arg12[%c0_11, %c0_12] : memref<2x128xf32, #tpu.memory_space<vmem>>, vector<2x128xf32>
    %c0_13 = arith.constant 0 : index
    %c0_14 = arith.constant 0 : index
    %9 = vector.load %arg14[%c0_13, %c0_14] : memref<2x32xf32, #tpu.memory_space<vmem>>, vector<2x32xf32>
    %c0_15 = arith.constant 0 : index
    %c0_16 = arith.constant 0 : index
    %10 = vector.load %arg9[%c0_15, %c0_16] : memref<2x32xf32, #tpu.memory_space<vmem>>, vector<2x32xf32>
    %c0_17 = arith.constant 0 : index
    %c0_18 = arith.constant 0 : index
    %11 = vector.load %arg10[%c0_17, %c0_18] : memref<2x32xf32, #tpu.memory_space<vmem>>, vector<2x32xf32>
    %c0_19 = arith.constant 0 : index
    %c0_20 = arith.constant 0 : index
    %12 = vector.load %arg15[%c0_19, %c0_20] : memref<2x32xf32, #tpu.memory_space<vmem>>, vector<2x32xf32>
    %c0_21 = arith.constant 0 : index
    %c0_22 = arith.constant 0 : index
    %13 = vector.load %arg16[%c0_21, %c0_22] : memref<2x32xf32, #tpu.memory_space<vmem>>, vector<2x32xf32>
    %c0_23 = arith.constant 0 : index
    %c0_24 = arith.constant 0 : index
    %c0_25 = arith.constant 0 : index
    %14 = vector.load %arg5[%c0_23, %c0_24, %c0_25] : memref<2x32x96xf32, #tpu.memory_space<vmem>>, vector<1x32x96xf32>
    %15 = vector.shape_cast %14 : vector<1x32x96xf32> to vector<32x96xf32>
    %cst_26 = arith.constant dense<0.000000e+00> : vector<16x96xf32>
    %16 = tpu.matmul %4, %15, %cst_26 {dimension_numbers = #tpu.dot_dimension_numbers<[1], [0], [0], [1], [0, 0, 1, 1], [], []>} : vector<16x32xf32>, vector<32x96xf32>, vector<16x96xf32> -> vector<16x96xf32>
    %17 = vector.extract_strided_slice %6 {offsets = [0, 0], sizes = [1, 96], strides = [1, 1]} : vector<2x96xf32> to vector<1x96xf32>
    %18 = vector.broadcast %17 : vector<1x96xf32> to vector<16x96xf32>
    %19 = arith.addf %16, %18 : vector<16x96xf32>
    %c0_27 = arith.constant 0 : index
    %c0_28 = arith.constant 0 : index
    %c0_29 = arith.constant 0 : index
    %20 = vector.load %arg7[%c0_27, %c0_28, %c0_29] : memref<2x32x32xf32, #tpu.memory_space<vmem>>, vector<1x32x32xf32>
    %21 = vector.shape_cast %20 : vector<1x32x32xf32> to vector<32x32xf32>
    %cst_30 = arith.constant 0.000000e+00 : f32
    %22 = vector.broadcast %cst_30 : f32 to vector<16x32xf32>
    %23 = vector.extract_strided_slice %19 {offsets = [0, 0], sizes = [16, 8], strides = [1, 1]} : vector<16x96xf32> to vector<16x8xf32>
    %24 = vector.extract_strided_slice %19 {offsets = [0, 32], sizes = [16, 8], strides = [1, 1]} : vector<16x96xf32> to vector<16x8xf32>
    %25 = vector.extract_strided_slice %19 {offsets = [0, 64], sizes = [16, 8], strides = [1, 1]} : vector<16x96xf32> to vector<16x8xf32>
    %cst_31 = arith.constant dense<0.000000e+00> : vector<16x16xf32>
    %26 = tpu.matmul %23, %24, %cst_31 {dimension_numbers = #tpu.dot_dimension_numbers<[1], [1], [0], [0], [0, 0, 1, 0], [], []>} : vector<16x8xf32>, vector<16x8xf32>, vector<16x16xf32> -> vector<16x16xf32>
    %cst_32 = arith.constant 0.353553385 : f32
    %27 = vector.broadcast %cst_32 : f32 to vector<16x16xf32>
    %28 = arith.mulf %26, %27 : vector<16x16xf32>
    %29 = arith.addf %28, %5 : vector<16x16xf32>
    %cst_33 = arith.constant dense<0xFF800000> : vector<16xf32>
    %30 = vector.multi_reduction <maximumf>, %29, %cst_33 [1] : vector<16x16xf32> to vector<16xf32>
    %31 = vector.shape_cast %30 : vector<16xf32> to vector<16x1xf32>
    %32 = vector.broadcast %31 : vector<16x1xf32> to vector<16x16xf32>
    %33 = arith.subf %29, %32 : vector<16x16xf32>
    %34 = math.exp %33 : vector<16x16xf32>
    %cst_34 = arith.constant dense<0.000000e+00> : vector<16xf32>
    %35 = vector.multi_reduction <add>, %34, %cst_34 [1] : vector<16x16xf32> to vector<16xf32>
    %36 = vector.shape_cast %35 : vector<16xf32> to vector<16x1xf32>
    %37 = tpu.reciprocal %36 {approx = true} : vector<16x1xf32> -> vector<16x1xf32>
    %38 = vector.broadcast %37 : vector<16x1xf32> to vector<16x16xf32>
    %39 = arith.mulf %34, %38 : vector<16x16xf32>
    %cst_35 = arith.constant dense<0.000000e+00> : vector<16x8xf32>
    %40 = tpu.matmul %39, %25, %cst_35 {dimension_numbers = #tpu.dot_dimension_numbers<[1], [0], [0], [1], [0, 0, 1, 1], [], []>} : vector<16x16xf32>, vector<16x8xf32>, vector<16x8xf32> -> vector<16x8xf32>
    %41 = vector.extract_strided_slice %21 {offsets = [0, 0], sizes = [8, 32], strides = [1, 1]} : vector<32x32xf32> to vector<8x32xf32>
    %cst_36 = arith.constant dense<0.000000e+00> : vector<16x32xf32>
    %42 = tpu.matmul %40, %41, %cst_36 {dimension_numbers = #tpu.dot_dimension_numbers<[1], [0], [0], [1], [0, 0, 1, 1], [], []>} : vector<16x8xf32>, vector<8x32xf32>, vector<16x32xf32> -> vector<16x32xf32>
    %43 = arith.addf %22, %42 : vector<16x32xf32>
    %44 = vector.extract_strided_slice %19 {offsets = [0, 8], sizes = [16, 8], strides = [1, 1]} : vector<16x96xf32> to vector<16x8xf32>
    %45 = vector.extract_strided_slice %19 {offsets = [0, 40], sizes = [16, 8], strides = [1, 1]} : vector<16x96xf32> to vector<16x8xf32>
    %46 = vector.extract_strided_slice %19 {offsets = [0, 72], sizes = [16, 8], strides = [1, 1]} : vector<16x96xf32> to vector<16x8xf32>
    %cst_37 = arith.constant dense<0.000000e+00> : vector<16x16xf32>
    %47 = tpu.matmul %44, %45, %cst_37 {dimension_numbers = #tpu.dot_dimension_numbers<[1], [1], [0], [0], [0, 0, 1, 0], [], []>} : vector<16x8xf32>, vector<16x8xf32>, vector<16x16xf32> -> vector<16x16xf32>
    %cst_38 = arith.constant 0.353553385 : f32
    %48 = vector.broadcast %cst_38 : f32 to vector<16x16xf32>
    %49 = arith.mulf %47, %48 : vector<16x16xf32>
    %50 = arith.addf %49, %5 : vector<16x16xf32>
    %cst_39 = arith.constant dense<0xFF800000> : vector<16xf32>
    %51 = vector.multi_reduction <maximumf>, %50, %cst_39 [1] : vector<16x16xf32> to vector<16xf32>
    %52 = vector.shape_cast %51 : vector<16xf32> to vector<16x1xf32>
    %53 = vector.broadcast %52 : vector<16x1xf32> to vector<16x16xf32>
    %54 = arith.subf %50, %53 : vector<16x16xf32>
    %55 = math.exp %54 : vector<16x16xf32>
    %cst_40 = arith.constant dense<0.000000e+00> : vector<16xf32>
    %56 = vector.multi_reduction <add>, %55, %cst_40 [1] : vector<16x16xf32> to vector<16xf32>
    %57 = vector.shape_cast %56 : vector<16xf32> to vector<16x1xf32>
    %58 = tpu.reciprocal %57 {approx = true} : vector<16x1xf32> -> vector<16x1xf32>
    %59 = vector.broadcast %58 : vector<16x1xf32> to vector<16x16xf32>
    %60 = arith.mulf %55, %59 : vector<16x16xf32>
    %cst_41 = arith.constant dense<0.000000e+00> : vector<16x8xf32>
    %61 = tpu.matmul %60, %46, %cst_41 {dimension_numbers = #tpu.dot_dimension_numbers<[1], [0], [0], [1], [0, 0, 1, 1], [], []>} : vector<16x16xf32>, vector<16x8xf32>, vector<16x8xf32> -> vector<16x8xf32>
    %62 = vector.extract_strided_slice %21 {offsets = [8, 0], sizes = [8, 32], strides = [1, 1]} : vector<32x32xf32> to vector<8x32xf32>
    %cst_42 = arith.constant dense<0.000000e+00> : vector<16x32xf32>
    %63 = tpu.matmul %61, %62, %cst_42 {dimension_numbers = #tpu.dot_dimension_numbers<[1], [0], [0], [1], [0, 0, 1, 1], [], []>} : vector<16x8xf32>, vector<8x32xf32>, vector<16x32xf32> -> vector<16x32xf32>
    %64 = arith.addf %43, %63 : vector<16x32xf32>
    %65 = vector.extract_strided_slice %19 {offsets = [0, 16], sizes = [16, 8], strides = [1, 1]} : vector<16x96xf32> to vector<16x8xf32>
    %66 = vector.extract_strided_slice %19 {offsets = [0, 48], sizes = [16, 8], strides = [1, 1]} : vector<16x96xf32> to vector<16x8xf32>
    %67 = vector.extract_strided_slice %19 {offsets = [0, 80], sizes = [16, 8], strides = [1, 1]} : vector<16x96xf32> to vector<16x8xf32>
    %cst_43 = arith.constant dense<0.000000e+00> : vector<16x16xf32>
    %68 = tpu.matmul %65, %66, %cst_43 {dimension_numbers = #tpu.dot_dimension_numbers<[1], [1], [0], [0], [0, 0, 1, 0], [], []>} : vector<16x8xf32>, vector<16x8xf32>, vector<16x16xf32> -> vector<16x16xf32>
    %cst_44 = arith.constant 0.353553385 : f32
    %69 = vector.broadcast %cst_44 : f32 to vector<16x16xf32>
    %70 = arith.mulf %68, %69 : vector<16x16xf32>
    %71 = arith.addf %70, %5 : vector<16x16xf32>
    %cst_45 = arith.constant dense<0xFF800000> : vector<16xf32>
    %72 = vector.multi_reduction <maximumf>, %71, %cst_45 [1] : vector<16x16xf32> to vector<16xf32>
    %73 = vector.shape_cast %72 : vector<16xf32> to vector<16x1xf32>
    %74 = vector.broadcast %73 : vector<16x1xf32> to vector<16x16xf32>
    %75 = arith.subf %71, %74 : vector<16x16xf32>
    %76 = math.exp %75 : vector<16x16xf32>
    %cst_46 = arith.constant dense<0.000000e+00> : vector<16xf32>
    %77 = vector.multi_reduction <add>, %76, %cst_46 [1] : vector<16x16xf32> to vector<16xf32>
    %78 = vector.shape_cast %77 : vector<16xf32> to vector<16x1xf32>
    %79 = tpu.reciprocal %78 {approx = true} : vector<16x1xf32> -> vector<16x1xf32>
    %80 = vector.broadcast %79 : vector<16x1xf32> to vector<16x16xf32>
    %81 = arith.mulf %76, %80 : vector<16x16xf32>
    %cst_47 = arith.constant dense<0.000000e+00> : vector<16x8xf32>
    %82 = tpu.matmul %81, %67, %cst_47 {dimension_numbers = #tpu.dot_dimension_numbers<[1], [0], [0], [1], [0, 0, 1, 1], [], []>} : vector<16x16xf32>, vector<16x8xf32>, vector<16x8xf32> -> vector<16x8xf32>
    %83 = vector.extract_strided_slice %21 {offsets = [16, 0], sizes = [8, 32], strides = [1, 1]} : vector<32x32xf32> to vector<8x32xf32>
    %cst_48 = arith.constant dense<0.000000e+00> : vector<16x32xf32>
    %84 = tpu.matmul %82, %83, %cst_48 {dimension_numbers = #tpu.dot_dimension_numbers<[1], [0], [0], [1], [0, 0, 1, 1], [], []>} : vector<16x8xf32>, vector<8x32xf32>, vector<16x32xf32> -> vector<16x32xf32>
    %85 = arith.addf %64, %84 : vector<16x32xf32>
    %86 = vector.extract_strided_slice %19 {offsets = [0, 24], sizes = [16, 8], strides = [1, 1]} : vector<16x96xf32> to vector<16x8xf32>
    %87 = vector.extract_strided_slice %19 {offsets = [0, 56], sizes = [16, 8], strides = [1, 1]} : vector<16x96xf32> to vector<16x8xf32>
    %88 = vector.extract_strided_slice %19 {offsets = [0, 88], sizes = [16, 8], strides = [1, 1]} : vector<16x96xf32> to vector<16x8xf32>
    %cst_49 = arith.constant dense<0.000000e+00> : vector<16x16xf32>
    %89 = tpu.matmul %86, %87, %cst_49 {dimension_numbers = #tpu.dot_dimension_numbers<[1], [1], [0], [0], [0, 0, 1, 0], [], []>} : vector<16x8xf32>, vector<16x8xf32>, vector<16x16xf32> -> vector<16x16xf32>
    %cst_50 = arith.constant 0.353553385 : f32
    %90 = vector.broadcast %cst_50 : f32 to vector<16x16xf32>
    %91 = arith.mulf %89, %90 : vector<16x16xf32>
    %92 = arith.addf %91, %5 : vector<16x16xf32>
    %cst_51 = arith.constant dense<0xFF800000> : vector<16xf32>
    %93 = vector.multi_reduction <maximumf>, %92, %cst_51 [1] : vector<16x16xf32> to vector<16xf32>
    %94 = vector.shape_cast %93 : vector<16xf32> to vector<16x1xf32>
    %95 = vector.broadcast %94 : vector<16x1xf32> to vector<16x16xf32>
    %96 = arith.subf %92, %95 : vector<16x16xf32>
    %97 = math.exp %96 : vector<16x16xf32>
    %cst_52 = arith.constant dense<0.000000e+00> : vector<16xf32>
    %98 = vector.multi_reduction <add>, %97, %cst_52 [1] : vector<16x16xf32> to vector<16xf32>
    %99 = vector.shape_cast %98 : vector<16xf32> to vector<16x1xf32>
    %100 = tpu.reciprocal %99 {approx = true} : vector<16x1xf32> -> vector<16x1xf32>
    %101 = vector.broadcast %100 : vector<16x1xf32> to vector<16x16xf32>
    %102 = arith.mulf %97, %101 : vector<16x16xf32>
    %cst_53 = arith.constant dense<0.000000e+00> : vector<16x8xf32>
    %103 = tpu.matmul %102, %88, %cst_53 {dimension_numbers = #tpu.dot_dimension_numbers<[1], [0], [0], [1], [0, 0, 1, 1], [], []>} : vector<16x16xf32>, vector<16x8xf32>, vector<16x8xf32> -> vector<16x8xf32>
    %104 = vector.extract_strided_slice %21 {offsets = [24, 0], sizes = [8, 32], strides = [1, 1]} : vector<32x32xf32> to vector<8x32xf32>
    %cst_54 = arith.constant dense<0.000000e+00> : vector<16x32xf32>
    %105 = tpu.matmul %103, %104, %cst_54 {dimension_numbers = #tpu.dot_dimension_numbers<[1], [0], [0], [1], [0, 0, 1, 1], [], []>} : vector<16x8xf32>, vector<8x32xf32>, vector<16x32xf32> -> vector<16x32xf32>
    %106 = arith.addf %85, %105 : vector<16x32xf32>
    %107 = vector.extract_strided_slice %7 {offsets = [0, 0], sizes = [1, 32], strides = [1, 1]} : vector<2x32xf32> to vector<1x32xf32>
    %108 = vector.broadcast %107 : vector<1x32xf32> to vector<16x32xf32>
    %109 = arith.addf %106, %108 : vector<16x32xf32>
    %110 = arith.addf %4, %109 : vector<16x32xf32>
    %111 = vector.extract_strided_slice %10 {offsets = [0, 0], sizes = [1, 32], strides = [1, 1]} : vector<2x32xf32> to vector<1x32xf32>
    %112 = vector.extract_strided_slice %11 {offsets = [0, 0], sizes = [1, 32], strides = [1, 1]} : vector<2x32xf32> to vector<1x32xf32>
    %cst_55 = arith.constant dense<0.000000e+00> : vector<16xf32>
    %113 = vector.multi_reduction <add>, %110, %cst_55 [1] : vector<16x32xf32> to vector<16xf32>
    %114 = vector.shape_cast %113 : vector<16xf32> to vector<16x1xf32>
    %cst_56 = arith.constant 3.200000e+01 : f32
    %115 = vector.broadcast %cst_56 : f32 to vector<16x1xf32>
    %116 = arith.divf %114, %115 : vector<16x1xf32>
    %117 = vector.broadcast %116 : vector<16x1xf32> to vector<16x32xf32>
    %118 = arith.subf %110, %117 : vector<16x32xf32>
    %119 = arith.mulf %118, %118 : vector<16x32xf32>
    %cst_57 = arith.constant dense<0.000000e+00> : vector<16xf32>
    %120 = vector.multi_reduction <add>, %119, %cst_57 [1] : vector<16x32xf32> to vector<16xf32>
    %121 = vector.shape_cast %120 : vector<16xf32> to vector<16x1xf32>
    %cst_58 = arith.constant 3.200000e+01 : f32
    %122 = vector.broadcast %cst_58 : f32 to vector<16x1xf32>
    %123 = arith.divf %121, %122 : vector<16x1xf32>
    %cst_59 = arith.constant 9.99999974E-6 : f32
    %124 = vector.broadcast %cst_59 : f32 to vector<16x1xf32>
    %125 = arith.addf %123, %124 : vector<16x1xf32>
    %126 = math.rsqrt %125 : vector<16x1xf32>
    %127 = vector.broadcast %126 : vector<16x1xf32> to vector<16x32xf32>
    %128 = arith.mulf %118, %127 : vector<16x32xf32>
    %129 = vector.broadcast %111 : vector<1x32xf32> to vector<16x32xf32>
    %130 = arith.mulf %128, %129 : vector<16x32xf32>
    %131 = vector.broadcast %112 : vector<1x32xf32> to vector<16x32xf32>
    %132 = arith.addf %130, %131 : vector<16x32xf32>
    %c0_60 = arith.constant 0 : index
    %c0_61 = arith.constant 0 : index
    %c0_62 = arith.constant 0 : index
    %133 = vector.load %arg11[%c0_60, %c0_61, %c0_62] : memref<2x32x128xf32, #tpu.memory_space<vmem>>, vector<1x32x128xf32>
    %134 = vector.shape_cast %133 : vector<1x32x128xf32> to vector<32x128xf32>
    %cst_63 = arith.constant dense<0.000000e+00> : vector<16x128xf32>
    %135 = tpu.matmul %132, %134, %cst_63 {dimension_numbers = #tpu.dot_dimension_numbers<[1], [0], [0], [1], [0, 0, 1, 1], [], []>} : vector<16x32xf32>, vector<32x128xf32>, vector<16x128xf32> -> vector<16x128xf32>
    %136 = vector.extract_strided_slice %8 {offsets = [0, 0], sizes = [1, 128], strides = [1, 1]} : vector<2x128xf32> to vector<1x128xf32>
    %137 = vector.broadcast %136 : vector<1x128xf32> to vector<16x128xf32>
    %138 = arith.addf %135, %137 : vector<16x128xf32>
    %cst_64 = arith.constant 0.000000e+00 : f32
    %139 = vector.broadcast %cst_64 : f32 to vector<16x128xf32>
    %140 = arith.maximumf %138, %139 : vector<16x128xf32>
    %c0_65 = arith.constant 0 : index
    %c0_66 = arith.constant 0 : index
    %c0_67 = arith.constant 0 : index
    %141 = vector.load %arg13[%c0_65, %c0_66, %c0_67] : memref<2x128x32xf32, #tpu.memory_space<vmem>>, vector<1x128x32xf32>
    %142 = vector.shape_cast %141 : vector<1x128x32xf32> to vector<128x32xf32>
    %cst_68 = arith.constant dense<0.000000e+00> : vector<16x32xf32>
    %143 = tpu.matmul %140, %142, %cst_68 {dimension_numbers = #tpu.dot_dimension_numbers<[1], [0], [0], [1], [0, 0, 1, 1], [], []>} : vector<16x128xf32>, vector<128x32xf32>, vector<16x32xf32> -> vector<16x32xf32>
    %144 = vector.extract_strided_slice %9 {offsets = [0, 0], sizes = [1, 32], strides = [1, 1]} : vector<2x32xf32> to vector<1x32xf32>
    %145 = vector.broadcast %144 : vector<1x32xf32> to vector<16x32xf32>
    %146 = arith.addf %143, %145 : vector<16x32xf32>
    %147 = arith.addf %132, %146 : vector<16x32xf32>
    %148 = vector.extract_strided_slice %12 {offsets = [0, 0], sizes = [1, 32], strides = [1, 1]} : vector<2x32xf32> to vector<1x32xf32>
    %149 = vector.extract_strided_slice %13 {offsets = [0, 0], sizes = [1, 32], strides = [1, 1]} : vector<2x32xf32> to vector<1x32xf32>
    %cst_69 = arith.constant dense<0.000000e+00> : vector<16xf32>
    %150 = vector.multi_reduction <add>, %147, %cst_69 [1] : vector<16x32xf32> to vector<16xf32>
    %151 = vector.shape_cast %150 : vector<16xf32> to vector<16x1xf32>
    %cst_70 = arith.constant 3.200000e+01 : f32
    %152 = vector.broadcast %cst_70 : f32 to vector<16x1xf32>
    %153 = arith.divf %151, %152 : vector<16x1xf32>
    %154 = vector.broadcast %153 : vector<16x1xf32> to vector<16x32xf32>
    %155 = arith.subf %147, %154 : vector<16x32xf32>
    %156 = arith.mulf %155, %155 : vector<16x32xf32>
    %cst_71 = arith.constant dense<0.000000e+00> : vector<16xf32>
    %157 = vector.multi_reduction <add>, %156, %cst_71 [1] : vector<16x32xf32> to vector<16xf32>
    %158 = vector.shape_cast %157 : vector<16xf32> to vector<16x1xf32>
    %cst_72 = arith.constant 3.200000e+01 : f32
    %159 = vector.broadcast %cst_72 : f32 to vector<16x1xf32>
    %160 = arith.divf %158, %159 : vector<16x1xf32>
    %cst_73 = arith.constant 9.99999974E-6 : f32
    %161 = vector.broadcast %cst_73 : f32 to vector<16x1xf32>
    %162 = arith.addf %160, %161 : vector<16x1xf32>
    %163 = math.rsqrt %162 : vector<16x1xf32>
    %164 = vector.broadcast %163 : vector<16x1xf32> to vector<16x32xf32>
    %165 = arith.mulf %155, %164 : vector<16x32xf32>
    %166 = vector.broadcast %148 : vector<1x32xf32> to vector<16x32xf32>
    %167 = arith.mulf %165, %166 : vector<16x32xf32>
    %168 = vector.broadcast %149 : vector<1x32xf32> to vector<16x32xf32>
    %169 = arith.addf %167, %168 : vector<16x32xf32>
    %c1 = arith.constant 1 : index
    %c0_74 = arith.constant 0 : index
    %c0_75 = arith.constant 0 : index
    %170 = vector.load %arg5[%c1, %c0_74, %c0_75] : memref<2x32x96xf32, #tpu.memory_space<vmem>>, vector<1x32x96xf32>
    %171 = vector.shape_cast %170 : vector<1x32x96xf32> to vector<32x96xf32>
    %cst_76 = arith.constant dense<0.000000e+00> : vector<16x96xf32>
    %172 = tpu.matmul %169, %171, %cst_76 {dimension_numbers = #tpu.dot_dimension_numbers<[1], [0], [0], [1], [0, 0, 1, 1], [], []>} : vector<16x32xf32>, vector<32x96xf32>, vector<16x96xf32> -> vector<16x96xf32>
    %173 = vector.extract_strided_slice %6 {offsets = [1, 0], sizes = [1, 96], strides = [1, 1]} : vector<2x96xf32> to vector<1x96xf32>
    %174 = vector.broadcast %173 : vector<1x96xf32> to vector<16x96xf32>
    %175 = arith.addf %172, %174 : vector<16x96xf32>
    %c1_77 = arith.constant 1 : index
    %c0_78 = arith.constant 0 : index
    %c0_79 = arith.constant 0 : index
    %176 = vector.load %arg7[%c1_77, %c0_78, %c0_79] : memref<2x32x32xf32, #tpu.memory_space<vmem>>, vector<1x32x32xf32>
    %177 = vector.shape_cast %176 : vector<1x32x32xf32> to vector<32x32xf32>
    %cst_80 = arith.constant 0.000000e+00 : f32
    %178 = vector.broadcast %cst_80 : f32 to vector<16x32xf32>
    %179 = vector.extract_strided_slice %175 {offsets = [0, 0], sizes = [16, 8], strides = [1, 1]} : vector<16x96xf32> to vector<16x8xf32>
    %180 = vector.extract_strided_slice %175 {offsets = [0, 32], sizes = [16, 8], strides = [1, 1]} : vector<16x96xf32> to vector<16x8xf32>
    %181 = vector.extract_strided_slice %175 {offsets = [0, 64], sizes = [16, 8], strides = [1, 1]} : vector<16x96xf32> to vector<16x8xf32>
    %cst_81 = arith.constant dense<0.000000e+00> : vector<16x16xf32>
    %182 = tpu.matmul %179, %180, %cst_81 {dimension_numbers = #tpu.dot_dimension_numbers<[1], [1], [0], [0], [0, 0, 1, 0], [], []>} : vector<16x8xf32>, vector<16x8xf32>, vector<16x16xf32> -> vector<16x16xf32>
    %cst_82 = arith.constant 0.353553385 : f32
    %183 = vector.broadcast %cst_82 : f32 to vector<16x16xf32>
    %184 = arith.mulf %182, %183 : vector<16x16xf32>
    %185 = arith.addf %184, %5 : vector<16x16xf32>
    %cst_83 = arith.constant dense<0xFF800000> : vector<16xf32>
    %186 = vector.multi_reduction <maximumf>, %185, %cst_83 [1] : vector<16x16xf32> to vector<16xf32>
    %187 = vector.shape_cast %186 : vector<16xf32> to vector<16x1xf32>
    %188 = vector.broadcast %187 : vector<16x1xf32> to vector<16x16xf32>
    %189 = arith.subf %185, %188 : vector<16x16xf32>
    %190 = math.exp %189 : vector<16x16xf32>
    %cst_84 = arith.constant dense<0.000000e+00> : vector<16xf32>
    %191 = vector.multi_reduction <add>, %190, %cst_84 [1] : vector<16x16xf32> to vector<16xf32>
    %192 = vector.shape_cast %191 : vector<16xf32> to vector<16x1xf32>
    %193 = tpu.reciprocal %192 {approx = true} : vector<16x1xf32> -> vector<16x1xf32>
    %194 = vector.broadcast %193 : vector<16x1xf32> to vector<16x16xf32>
    %195 = arith.mulf %190, %194 : vector<16x16xf32>
    %cst_85 = arith.constant dense<0.000000e+00> : vector<16x8xf32>
    %196 = tpu.matmul %195, %181, %cst_85 {dimension_numbers = #tpu.dot_dimension_numbers<[1], [0], [0], [1], [0, 0, 1, 1], [], []>} : vector<16x16xf32>, vector<16x8xf32>, vector<16x8xf32> -> vector<16x8xf32>
    %197 = vector.extract_strided_slice %177 {offsets = [0, 0], sizes = [8, 32], strides = [1, 1]} : vector<32x32xf32> to vector<8x32xf32>
    %cst_86 = arith.constant dense<0.000000e+00> : vector<16x32xf32>
    %198 = tpu.matmul %196, %197, %cst_86 {dimension_numbers = #tpu.dot_dimension_numbers<[1], [0], [0], [1], [0, 0, 1, 1], [], []>} : vector<16x8xf32>, vector<8x32xf32>, vector<16x32xf32> -> vector<16x32xf32>
    %199 = arith.addf %178, %198 : vector<16x32xf32>
    %200 = vector.extract_strided_slice %175 {offsets = [0, 8], sizes = [16, 8], strides = [1, 1]} : vector<16x96xf32> to vector<16x8xf32>
    %201 = vector.extract_strided_slice %175 {offsets = [0, 40], sizes = [16, 8], strides = [1, 1]} : vector<16x96xf32> to vector<16x8xf32>
    %202 = vector.extract_strided_slice %175 {offsets = [0, 72], sizes = [16, 8], strides = [1, 1]} : vector<16x96xf32> to vector<16x8xf32>
    %cst_87 = arith.constant dense<0.000000e+00> : vector<16x16xf32>
    %203 = tpu.matmul %200, %201, %cst_87 {dimension_numbers = #tpu.dot_dimension_numbers<[1], [1], [0], [0], [0, 0, 1, 0], [], []>} : vector<16x8xf32>, vector<16x8xf32>, vector<16x16xf32> -> vector<16x16xf32>
    %cst_88 = arith.constant 0.353553385 : f32
    %204 = vector.broadcast %cst_88 : f32 to vector<16x16xf32>
    %205 = arith.mulf %203, %204 : vector<16x16xf32>
    %206 = arith.addf %205, %5 : vector<16x16xf32>
    %cst_89 = arith.constant dense<0xFF800000> : vector<16xf32>
    %207 = vector.multi_reduction <maximumf>, %206, %cst_89 [1] : vector<16x16xf32> to vector<16xf32>
    %208 = vector.shape_cast %207 : vector<16xf32> to vector<16x1xf32>
    %209 = vector.broadcast %208 : vector<16x1xf32> to vector<16x16xf32>
    %210 = arith.subf %206, %209 : vector<16x16xf32>
    %211 = math.exp %210 : vector<16x16xf32>
    %cst_90 = arith.constant dense<0.000000e+00> : vector<16xf32>
    %212 = vector.multi_reduction <add>, %211, %cst_90 [1] : vector<16x16xf32> to vector<16xf32>
    %213 = vector.shape_cast %212 : vector<16xf32> to vector<16x1xf32>
    %214 = tpu.reciprocal %213 {approx = true} : vector<16x1xf32> -> vector<16x1xf32>
    %215 = vector.broadcast %214 : vector<16x1xf32> to vector<16x16xf32>
    %216 = arith.mulf %211, %215 : vector<16x16xf32>
    %cst_91 = arith.constant dense<0.000000e+00> : vector<16x8xf32>
    %217 = tpu.matmul %216, %202, %cst_91 {dimension_numbers = #tpu.dot_dimension_numbers<[1], [0], [0], [1], [0, 0, 1, 1], [], []>} : vector<16x16xf32>, vector<16x8xf32>, vector<16x8xf32> -> vector<16x8xf32>
    %218 = vector.extract_strided_slice %177 {offsets = [8, 0], sizes = [8, 32], strides = [1, 1]} : vector<32x32xf32> to vector<8x32xf32>
    %cst_92 = arith.constant dense<0.000000e+00> : vector<16x32xf32>
    %219 = tpu.matmul %217, %218, %cst_92 {dimension_numbers = #tpu.dot_dimension_numbers<[1], [0], [0], [1], [0, 0, 1, 1], [], []>} : vector<16x8xf32>, vector<8x32xf32>, vector<16x32xf32> -> vector<16x32xf32>
    %220 = arith.addf %199, %219 : vector<16x32xf32>
    %221 = vector.extract_strided_slice %175 {offsets = [0, 16], sizes = [16, 8], strides = [1, 1]} : vector<16x96xf32> to vector<16x8xf32>
    %222 = vector.extract_strided_slice %175 {offsets = [0, 48], sizes = [16, 8], strides = [1, 1]} : vector<16x96xf32> to vector<16x8xf32>
    %223 = vector.extract_strided_slice %175 {offsets = [0, 80], sizes = [16, 8], strides = [1, 1]} : vector<16x96xf32> to vector<16x8xf32>
    %cst_93 = arith.constant dense<0.000000e+00> : vector<16x16xf32>
    %224 = tpu.matmul %221, %222, %cst_93 {dimension_numbers = #tpu.dot_dimension_numbers<[1], [1], [0], [0], [0, 0, 1, 0], [], []>} : vector<16x8xf32>, vector<16x8xf32>, vector<16x16xf32> -> vector<16x16xf32>
    %cst_94 = arith.constant 0.353553385 : f32
    %225 = vector.broadcast %cst_94 : f32 to vector<16x16xf32>
    %226 = arith.mulf %224, %225 : vector<16x16xf32>
    %227 = arith.addf %226, %5 : vector<16x16xf32>
    %cst_95 = arith.constant dense<0xFF800000> : vector<16xf32>
    %228 = vector.multi_reduction <maximumf>, %227, %cst_95 [1] : vector<16x16xf32> to vector<16xf32>
    %229 = vector.shape_cast %228 : vector<16xf32> to vector<16x1xf32>
    %230 = vector.broadcast %229 : vector<16x1xf32> to vector<16x16xf32>
    %231 = arith.subf %227, %230 : vector<16x16xf32>
    %232 = math.exp %231 : vector<16x16xf32>
    %cst_96 = arith.constant dense<0.000000e+00> : vector<16xf32>
    %233 = vector.multi_reduction <add>, %232, %cst_96 [1] : vector<16x16xf32> to vector<16xf32>
    %234 = vector.shape_cast %233 : vector<16xf32> to vector<16x1xf32>
    %235 = tpu.reciprocal %234 {approx = true} : vector<16x1xf32> -> vector<16x1xf32>
    %236 = vector.broadcast %235 : vector<16x1xf32> to vector<16x16xf32>
    %237 = arith.mulf %232, %236 : vector<16x16xf32>
    %cst_97 = arith.constant dense<0.000000e+00> : vector<16x8xf32>
    %238 = tpu.matmul %237, %223, %cst_97 {dimension_numbers = #tpu.dot_dimension_numbers<[1], [0], [0], [1], [0, 0, 1, 1], [], []>} : vector<16x16xf32>, vector<16x8xf32>, vector<16x8xf32> -> vector<16x8xf32>
    %239 = vector.extract_strided_slice %177 {offsets = [16, 0], sizes = [8, 32], strides = [1, 1]} : vector<32x32xf32> to vector<8x32xf32>
    %cst_98 = arith.constant dense<0.000000e+00> : vector<16x32xf32>
    %240 = tpu.matmul %238, %239, %cst_98 {dimension_numbers = #tpu.dot_dimension_numbers<[1], [0], [0], [1], [0, 0, 1, 1], [], []>} : vector<16x8xf32>, vector<8x32xf32>, vector<16x32xf32> -> vector<16x32xf32>
    %241 = arith.addf %220, %240 : vector<16x32xf32>
    %242 = vector.extract_strided_slice %175 {offsets = [0, 24], sizes = [16, 8], strides = [1, 1]} : vector<16x96xf32> to vector<16x8xf32>
    %243 = vector.extract_strided_slice %175 {offsets = [0, 56], sizes = [16, 8], strides = [1, 1]} : vector<16x96xf32> to vector<16x8xf32>
    %244 = vector.extract_strided_slice %175 {offsets = [0, 88], sizes = [16, 8], strides = [1, 1]} : vector<16x96xf32> to vector<16x8xf32>
    %cst_99 = arith.constant dense<0.000000e+00> : vector<16x16xf32>
    %245 = tpu.matmul %242, %243, %cst_99 {dimension_numbers = #tpu.dot_dimension_numbers<[1], [1], [0], [0], [0, 0, 1, 0], [], []>} : vector<16x8xf32>, vector<16x8xf32>, vector<16x16xf32> -> vector<16x16xf32>
    %cst_100 = arith.constant 0.353553385 : f32
    %246 = vector.broadcast %cst_100 : f32 to vector<16x16xf32>
    %247 = arith.mulf %245, %246 : vector<16x16xf32>
    %248 = arith.addf %247, %5 : vector<16x16xf32>
    %cst_101 = arith.constant dense<0xFF800000> : vector<16xf32>
    %249 = vector.multi_reduction <maximumf>, %248, %cst_101 [1] : vector<16x16xf32> to vector<16xf32>
    %250 = vector.shape_cast %249 : vector<16xf32> to vector<16x1xf32>
    %251 = vector.broadcast %250 : vector<16x1xf32> to vector<16x16xf32>
    %252 = arith.subf %248, %251 : vector<16x16xf32>
    %253 = math.exp %252 : vector<16x16xf32>
    %cst_102 = arith.constant dense<0.000000e+00> : vector<16xf32>
    %254 = vector.multi_reduction <add>, %253, %cst_102 [1] : vector<16x16xf32> to vector<16xf32>
    %255 = vector.shape_cast %254 : vector<16xf32> to vector<16x1xf32>
    %256 = tpu.reciprocal %255 {approx = true} : vector<16x1xf32> -> vector<16x1xf32>
    %257 = vector.broadcast %256 : vector<16x1xf32> to vector<16x16xf32>
    %258 = arith.mulf %253, %257 : vector<16x16xf32>
    %cst_103 = arith.constant dense<0.000000e+00> : vector<16x8xf32>
    %259 = tpu.matmul %258, %244, %cst_103 {dimension_numbers = #tpu.dot_dimension_numbers<[1], [0], [0], [1], [0, 0, 1, 1], [], []>} : vector<16x16xf32>, vector<16x8xf32>, vector<16x8xf32> -> vector<16x8xf32>
    %260 = vector.extract_strided_slice %177 {offsets = [24, 0], sizes = [8, 32], strides = [1, 1]} : vector<32x32xf32> to vector<8x32xf32>
    %cst_104 = arith.constant dense<0.000000e+00> : vector<16x32xf32>
    %261 = tpu.matmul %259, %260, %cst_104 {dimension_numbers = #tpu.dot_dimension_numbers<[1], [0], [0], [1], [0, 0, 1, 1], [], []>} : vector<16x8xf32>, vector<8x32xf32>, vector<16x32xf32> -> vector<16x32xf32>
    %262 = arith.addf %241, %261 : vector<16x32xf32>
    %263 = vector.extract_strided_slice %7 {offsets = [1, 0], sizes = [1, 32], strides = [1, 1]} : vector<2x32xf32> to vector<1x32xf32>
    %264 = vector.broadcast %263 : vector<1x32xf32> to vector<16x32xf32>
    %265 = arith.addf %262, %264 : vector<16x32xf32>
    %266 = arith.addf %169, %265 : vector<16x32xf32>
    %267 = vector.extract_strided_slice %10 {offsets = [1, 0], sizes = [1, 32], strides = [1, 1]} : vector<2x32xf32> to vector<1x32xf32>
    %268 = vector.extract_strided_slice %11 {offsets = [1, 0], sizes = [1, 32], strides = [1, 1]} : vector<2x32xf32> to vector<1x32xf32>
    %cst_105 = arith.constant dense<0.000000e+00> : vector<16xf32>
    %269 = vector.multi_reduction <add>, %266, %cst_105 [1] : vector<16x32xf32> to vector<16xf32>
    %270 = vector.shape_cast %269 : vector<16xf32> to vector<16x1xf32>
    %cst_106 = arith.constant 3.200000e+01 : f32
    %271 = vector.broadcast %cst_106 : f32 to vector<16x1xf32>
    %272 = arith.divf %270, %271 : vector<16x1xf32>
    %273 = vector.broadcast %272 : vector<16x1xf32> to vector<16x32xf32>
    %274 = arith.subf %266, %273 : vector<16x32xf32>
    %275 = arith.mulf %274, %274 : vector<16x32xf32>
    %cst_107 = arith.constant dense<0.000000e+00> : vector<16xf32>
    %276 = vector.multi_reduction <add>, %275, %cst_107 [1] : vector<16x32xf32> to vector<16xf32>
    %277 = vector.shape_cast %276 : vector<16xf32> to vector<16x1xf32>
    %cst_108 = arith.constant 3.200000e+01 : f32
    %278 = vector.broadcast %cst_108 : f32 to vector<16x1xf32>
    %279 = arith.divf %277, %278 : vector<16x1xf32>
    %cst_109 = arith.constant 9.99999974E-6 : f32
    %280 = vector.broadcast %cst_109 : f32 to vector<16x1xf32>
    %281 = arith.addf %279, %280 : vector<16x1xf32>
    %282 = math.rsqrt %281 : vector<16x1xf32>
    %283 = vector.broadcast %282 : vector<16x1xf32> to vector<16x32xf32>
    %284 = arith.mulf %274, %283 : vector<16x32xf32>
    %285 = vector.broadcast %267 : vector<1x32xf32> to vector<16x32xf32>
    %286 = arith.mulf %284, %285 : vector<16x32xf32>
    %287 = vector.broadcast %268 : vector<1x32xf32> to vector<16x32xf32>
    %288 = arith.addf %286, %287 : vector<16x32xf32>
    %c1_110 = arith.constant 1 : index
    %c0_111 = arith.constant 0 : index
    %c0_112 = arith.constant 0 : index
    %289 = vector.load %arg11[%c1_110, %c0_111, %c0_112] : memref<2x32x128xf32, #tpu.memory_space<vmem>>, vector<1x32x128xf32>
    %290 = vector.shape_cast %289 : vector<1x32x128xf32> to vector<32x128xf32>
    %cst_113 = arith.constant dense<0.000000e+00> : vector<16x128xf32>
    %291 = tpu.matmul %288, %290, %cst_113 {dimension_numbers = #tpu.dot_dimension_numbers<[1], [0], [0], [1], [0, 0, 1, 1], [], []>} : vector<16x32xf32>, vector<32x128xf32>, vector<16x128xf32> -> vector<16x128xf32>
    %292 = vector.extract_strided_slice %8 {offsets = [1, 0], sizes = [1, 128], strides = [1, 1]} : vector<2x128xf32> to vector<1x128xf32>
    %293 = vector.broadcast %292 : vector<1x128xf32> to vector<16x128xf32>
    %294 = arith.addf %291, %293 : vector<16x128xf32>
    %cst_114 = arith.constant 0.000000e+00 : f32
    %295 = vector.broadcast %cst_114 : f32 to vector<16x128xf32>
    %296 = arith.maximumf %294, %295 : vector<16x128xf32>
    %c1_115 = arith.constant 1 : index
    %c0_116 = arith.constant 0 : index
    %c0_117 = arith.constant 0 : index
    %297 = vector.load %arg13[%c1_115, %c0_116, %c0_117] : memref<2x128x32xf32, #tpu.memory_space<vmem>>, vector<1x128x32xf32>
    %298 = vector.shape_cast %297 : vector<1x128x32xf32> to vector<128x32xf32>
    %cst_118 = arith.constant dense<0.000000e+00> : vector<16x32xf32>
    %299 = tpu.matmul %296, %298, %cst_118 {dimension_numbers = #tpu.dot_dimension_numbers<[1], [0], [0], [1], [0, 0, 1, 1], [], []>} : vector<16x128xf32>, vector<128x32xf32>, vector<16x32xf32> -> vector<16x32xf32>
    %300 = vector.extract_strided_slice %9 {offsets = [1, 0], sizes = [1, 32], strides = [1, 1]} : vector<2x32xf32> to vector<1x32xf32>
    %301 = vector.broadcast %300 : vector<1x32xf32> to vector<16x32xf32>
    %302 = arith.addf %299, %301 : vector<16x32xf32>
    %303 = arith.addf %288, %302 : vector<16x32xf32>
    %304 = vector.extract_strided_slice %12 {offsets = [1, 0], sizes = [1, 32], strides = [1, 1]} : vector<2x32xf32> to vector<1x32xf32>
    %305 = vector.extract_strided_slice %13 {offsets = [1, 0], sizes = [1, 32], strides = [1, 1]} : vector<2x32xf32> to vector<1x32xf32>
    %cst_119 = arith.constant dense<0.000000e+00> : vector<16xf32>
    %306 = vector.multi_reduction <add>, %303, %cst_119 [1] : vector<16x32xf32> to vector<16xf32>
    %307 = vector.shape_cast %306 : vector<16xf32> to vector<16x1xf32>
    %cst_120 = arith.constant 3.200000e+01 : f32
    %308 = vector.broadcast %cst_120 : f32 to vector<16x1xf32>
    %309 = arith.divf %307, %308 : vector<16x1xf32>
    %310 = vector.broadcast %309 : vector<16x1xf32> to vector<16x32xf32>
    %311 = arith.subf %303, %310 : vector<16x32xf32>
    %312 = arith.mulf %311, %311 : vector<16x32xf32>
    %cst_121 = arith.constant dense<0.000000e+00> : vector<16xf32>
    %313 = vector.multi_reduction <add>, %312, %cst_121 [1] : vector<16x32xf32> to vector<16xf32>
    %314 = vector.shape_cast %313 : vector<16xf32> to vector<16x1xf32>
    %cst_122 = arith.constant 3.200000e+01 : f32
    %315 = vector.broadcast %cst_122 : f32 to vector<16x1xf32>
    %316 = arith.divf %314, %315 : vector<16x1xf32>
    %cst_123 = arith.constant 9.99999974E-6 : f32
    %317 = vector.broadcast %cst_123 : f32 to vector<16x1xf32>
    %318 = arith.addf %316, %317 : vector<16x1xf32>
    %319 = math.rsqrt %318 : vector<16x1xf32>
    %320 = vector.broadcast %319 : vector<16x1xf32> to vector<16x32xf32>
    %321 = arith.mulf %311, %320 : vector<16x32xf32>
    %322 = vector.broadcast %304 : vector<1x32xf32> to vector<16x32xf32>
    %323 = arith.mulf %321, %322 : vector<16x32xf32>
    %324 = vector.broadcast %305 : vector<1x32xf32> to vector<16x32xf32>
    %325 = arith.addf %323, %324 : vector<16x32xf32>
    %c0_124 = arith.constant 0 : index
    %c0_125 = arith.constant 0 : index
    %326 = vector.load %arg17[%c0_124, %c0_125] : memref<256x5xf32, #tpu.memory_space<vmem>>, vector<256x5xf32>
    %c0_126 = arith.constant 0 : index
    %c0_127 = arith.constant 0 : index
    %327 = vector.load %arg18[%c0_126, %c0_127] : memref<1x5xf32, #tpu.memory_space<vmem>>, vector<1x5xf32>
    %328 = vector.extract_strided_slice %325 {offsets = [0, 0], sizes = [1, 32], strides = [1, 1]} : vector<16x32xf32> to vector<1x32xf32>
    %329 = vector.extract_strided_slice %326 {offsets = [0, 0], sizes = [32, 5], strides = [1, 1]} : vector<256x5xf32> to vector<32x5xf32>
    %cst_128 = arith.constant dense<0.000000e+00> : vector<1x5xf32>
    %330 = tpu.matmul %328, %329, %cst_128 {dimension_numbers = #tpu.dot_dimension_numbers<[1], [0], [0], [1], [0, 0, 1, 1], [], []>} : vector<1x32xf32>, vector<32x5xf32>, vector<1x5xf32> -> vector<1x5xf32>
    %331 = arith.addf %327, %330 : vector<1x5xf32>
    %332 = vector.extract_strided_slice %325 {offsets = [1, 0], sizes = [1, 32], strides = [1, 1]} : vector<16x32xf32> to vector<1x32xf32>
    %333 = vector.extract_strided_slice %326 {offsets = [32, 0], sizes = [32, 5], strides = [1, 1]} : vector<256x5xf32> to vector<32x5xf32>
    %cst_129 = arith.constant dense<0.000000e+00> : vector<1x5xf32>
    %334 = tpu.matmul %332, %333, %cst_129 {dimension_numbers = #tpu.dot_dimension_numbers<[1], [0], [0], [1], [0, 0, 1, 1], [], []>} : vector<1x32xf32>, vector<32x5xf32>, vector<1x5xf32> -> vector<1x5xf32>
    %335 = arith.addf %331, %334 : vector<1x5xf32>
    %336 = vector.extract_strided_slice %325 {offsets = [2, 0], sizes = [1, 32], strides = [1, 1]} : vector<16x32xf32> to vector<1x32xf32>
    %337 = vector.extract_strided_slice %326 {offsets = [64, 0], sizes = [32, 5], strides = [1, 1]} : vector<256x5xf32> to vector<32x5xf32>
    %cst_130 = arith.constant dense<0.000000e+00> : vector<1x5xf32>
    %338 = tpu.matmul %336, %337, %cst_130 {dimension_numbers = #tpu.dot_dimension_numbers<[1], [0], [0], [1], [0, 0, 1, 1], [], []>} : vector<1x32xf32>, vector<32x5xf32>, vector<1x5xf32> -> vector<1x5xf32>
    %339 = arith.addf %335, %338 : vector<1x5xf32>
    %340 = vector.extract_strided_slice %325 {offsets = [3, 0], sizes = [1, 32], strides = [1, 1]} : vector<16x32xf32> to vector<1x32xf32>
    %341 = vector.extract_strided_slice %326 {offsets = [96, 0], sizes = [32, 5], strides = [1, 1]} : vector<256x5xf32> to vector<32x5xf32>
    %cst_131 = arith.constant dense<0.000000e+00> : vector<1x5xf32>
    %342 = tpu.matmul %340, %341, %cst_131 {dimension_numbers = #tpu.dot_dimension_numbers<[1], [0], [0], [1], [0, 0, 1, 1], [], []>} : vector<1x32xf32>, vector<32x5xf32>, vector<1x5xf32> -> vector<1x5xf32>
    %343 = arith.addf %339, %342 : vector<1x5xf32>
    %344 = vector.extract_strided_slice %325 {offsets = [4, 0], sizes = [1, 32], strides = [1, 1]} : vector<16x32xf32> to vector<1x32xf32>
    %345 = vector.extract_strided_slice %326 {offsets = [128, 0], sizes = [32, 5], strides = [1, 1]} : vector<256x5xf32> to vector<32x5xf32>
    %cst_132 = arith.constant dense<0.000000e+00> : vector<1x5xf32>
    %346 = tpu.matmul %344, %345, %cst_132 {dimension_numbers = #tpu.dot_dimension_numbers<[1], [0], [0], [1], [0, 0, 1, 1], [], []>} : vector<1x32xf32>, vector<32x5xf32>, vector<1x5xf32> -> vector<1x5xf32>
    %347 = arith.addf %343, %346 : vector<1x5xf32>
    %348 = vector.extract_strided_slice %325 {offsets = [5, 0], sizes = [1, 32], strides = [1, 1]} : vector<16x32xf32> to vector<1x32xf32>
    %349 = vector.extract_strided_slice %326 {offsets = [160, 0], sizes = [32, 5], strides = [1, 1]} : vector<256x5xf32> to vector<32x5xf32>
    %cst_133 = arith.constant dense<0.000000e+00> : vector<1x5xf32>
    %350 = tpu.matmul %348, %349, %cst_133 {dimension_numbers = #tpu.dot_dimension_numbers<[1], [0], [0], [1], [0, 0, 1, 1], [], []>} : vector<1x32xf32>, vector<32x5xf32>, vector<1x5xf32> -> vector<1x5xf32>
    %351 = arith.addf %347, %350 : vector<1x5xf32>
    %352 = vector.extract_strided_slice %325 {offsets = [6, 0], sizes = [1, 32], strides = [1, 1]} : vector<16x32xf32> to vector<1x32xf32>
    %353 = vector.extract_strided_slice %326 {offsets = [192, 0], sizes = [32, 5], strides = [1, 1]} : vector<256x5xf32> to vector<32x5xf32>
    %cst_134 = arith.constant dense<0.000000e+00> : vector<1x5xf32>
    %354 = tpu.matmul %352, %353, %cst_134 {dimension_numbers = #tpu.dot_dimension_numbers<[1], [0], [0], [1], [0, 0, 1, 1], [], []>} : vector<1x32xf32>, vector<32x5xf32>, vector<1x5xf32> -> vector<1x5xf32>
    %355 = arith.addf %351, %354 : vector<1x5xf32>
    %356 = vector.extract_strided_slice %325 {offsets = [7, 0], sizes = [1, 32], strides = [1, 1]} : vector<16x32xf32> to vector<1x32xf32>
    %357 = vector.extract_strided_slice %326 {offsets = [224, 0], sizes = [32, 5], strides = [1, 1]} : vector<256x5xf32> to vector<32x5xf32>
    %cst_135 = arith.constant dense<0.000000e+00> : vector<1x5xf32>
    %358 = tpu.matmul %356, %357, %cst_135 {dimension_numbers = #tpu.dot_dimension_numbers<[1], [0], [0], [1], [0, 0, 1, 1], [], []>} : vector<1x32xf32>, vector<32x5xf32>, vector<1x5xf32> -> vector<1x5xf32>
    %359 = arith.addf %355, %358 : vector<1x5xf32>
    %c0_136 = arith.constant 0 : index
    %c0_137 = arith.constant 0 : index
    %360 = vector.load %arg19[%c0_136, %c0_137] : memref<2x5xf32, #tpu.memory_space<vmem>>, vector<1x5xf32>
    tpu.vector_store %arg19[%c0_136, %c0_137], %359 {strides = array<i32>} : memref<2x5xf32, #tpu.memory_space<vmem>>, vector<1x5xf32>,
    %361 = vector.extract_strided_slice %325 {offsets = [8, 0], sizes = [1, 32], strides = [1, 1]} : vector<16x32xf32> to vector<1x32xf32>
    %362 = vector.extract_strided_slice %326 {offsets = [0, 0], sizes = [32, 5], strides = [1, 1]} : vector<256x5xf32> to vector<32x5xf32>
    %cst_138 = arith.constant dense<0.000000e+00> : vector<1x5xf32>
    %363 = tpu.matmul %361, %362, %cst_138 {dimension_numbers = #tpu.dot_dimension_numbers<[1], [0], [0], [1], [0, 0, 1, 1], [], []>} : vector<1x32xf32>, vector<32x5xf32>, vector<1x5xf32> -> vector<1x5xf32>
    %364 = arith.addf %327, %363 : vector<1x5xf32>
    %365 = vector.extract_strided_slice %325 {offsets = [9, 0], sizes = [1, 32], strides = [1, 1]} : vector<16x32xf32> to vector<1x32xf32>
    %366 = vector.extract_strided_slice %326 {offsets = [32, 0], sizes = [32, 5], strides = [1, 1]} : vector<256x5xf32> to vector<32x5xf32>
    %cst_139 = arith.constant dense<0.000000e+00> : vector<1x5xf32>
    %367 = tpu.matmul %365, %366, %cst_139 {dimension_numbers = #tpu.dot_dimension_numbers<[1], [0], [0], [1], [0, 0, 1, 1], [], []>} : vector<1x32xf32>, vector<32x5xf32>, vector<1x5xf32> -> vector<1x5xf32>
    %368 = arith.addf %364, %367 : vector<1x5xf32>
    %369 = vector.extract_strided_slice %325 {offsets = [10, 0], sizes = [1, 32], strides = [1, 1]} : vector<16x32xf32> to vector<1x32xf32>
    %370 = vector.extract_strided_slice %326 {offsets = [64, 0], sizes = [32, 5], strides = [1, 1]} : vector<256x5xf32> to vector<32x5xf32>
    %cst_140 = arith.constant dense<0.000000e+00> : vector<1x5xf32>
    %371 = tpu.matmul %369, %370, %cst_140 {dimension_numbers = #tpu.dot_dimension_numbers<[1], [0], [0], [1], [0, 0, 1, 1], [], []>} : vector<1x32xf32>, vector<32x5xf32>, vector<1x5xf32> -> vector<1x5xf32>
    %372 = arith.addf %368, %371 : vector<1x5xf32>
    %373 = vector.extract_strided_slice %325 {offsets = [11, 0], sizes = [1, 32], strides = [1, 1]} : vector<16x32xf32> to vector<1x32xf32>
    %374 = vector.extract_strided_slice %326 {offsets = [96, 0], sizes = [32, 5], strides = [1, 1]} : vector<256x5xf32> to vector<32x5xf32>
    %cst_141 = arith.constant dense<0.000000e+00> : vector<1x5xf32>
    %375 = tpu.matmul %373, %374, %cst_141 {dimension_numbers = #tpu.dot_dimension_numbers<[1], [0], [0], [1], [0, 0, 1, 1], [], []>} : vector<1x32xf32>, vector<32x5xf32>, vector<1x5xf32> -> vector<1x5xf32>
    %376 = arith.addf %372, %375 : vector<1x5xf32>
    %377 = vector.extract_strided_slice %325 {offsets = [12, 0], sizes = [1, 32], strides = [1, 1]} : vector<16x32xf32> to vector<1x32xf32>
    %378 = vector.extract_strided_slice %326 {offsets = [128, 0], sizes = [32, 5], strides = [1, 1]} : vector<256x5xf32> to vector<32x5xf32>
    %cst_142 = arith.constant dense<0.000000e+00> : vector<1x5xf32>
    %379 = tpu.matmul %377, %378, %cst_142 {dimension_numbers = #tpu.dot_dimension_numbers<[1], [0], [0], [1], [0, 0, 1, 1], [], []>} : vector<1x32xf32>, vector<32x5xf32>, vector<1x5xf32> -> vector<1x5xf32>
    %380 = arith.addf %376, %379 : vector<1x5xf32>
    %381 = vector.extract_strided_slice %325 {offsets = [13, 0], sizes = [1, 32], strides = [1, 1]} : vector<16x32xf32> to vector<1x32xf32>
    %382 = vector.extract_strided_slice %326 {offsets = [160, 0], sizes = [32, 5], strides = [1, 1]} : vector<256x5xf32> to vector<32x5xf32>
    %cst_143 = arith.constant dense<0.000000e+00> : vector<1x5xf32>
    %383 = tpu.matmul %381, %382, %cst_143 {dimension_numbers = #tpu.dot_dimension_numbers<[1], [0], [0], [1], [0, 0, 1, 1], [], []>} : vector<1x32xf32>, vector<32x5xf32>, vector<1x5xf32> -> vector<1x5xf32>
    %384 = arith.addf %380, %383 : vector<1x5xf32>
    %385 = vector.extract_strided_slice %325 {offsets = [14, 0], sizes = [1, 32], strides = [1, 1]} : vector<16x32xf32> to vector<1x32xf32>
    %386 = vector.extract_strided_slice %326 {offsets = [192, 0], sizes = [32, 5], strides = [1, 1]} : vector<256x5xf32> to vector<32x5xf32>
    %cst_144 = arith.constant dense<0.000000e+00> : vector<1x5xf32>
    %387 = tpu.matmul %385, %386, %cst_144 {dimension_numbers = #tpu.dot_dimension_numbers<[1], [0], [0], [1], [0, 0, 1, 1], [], []>} : vector<1x32xf32>, vector<32x5xf32>, vector<1x5xf32> -> vector<1x5xf32>
    %388 = arith.addf %384, %387 : vector<1x5xf32>
    %389 = vector.extract_strided_slice %325 {offsets = [15, 0], sizes = [1, 32], strides = [1, 1]} : vector<16x32xf32> to vector<1x32xf32>
    %390 = vector.extract_strided_slice %326 {offsets = [224, 0], sizes = [32, 5], strides = [1, 1]} : vector<256x5xf32> to vector<32x5xf32>
    %cst_145 = arith.constant dense<0.000000e+00> : vector<1x5xf32>
    %391 = tpu.matmul %389, %390, %cst_145 {dimension_numbers = #tpu.dot_dimension_numbers<[1], [0], [0], [1], [0, 0, 1, 1], [], []>} : vector<1x32xf32>, vector<32x5xf32>, vector<1x5xf32> -> vector<1x5xf32>
    %392 = arith.addf %388, %391 : vector<1x5xf32>
    %c1_146 = arith.constant 1 : index
    %c0_147 = arith.constant 0 : index
    %393 = vector.load %arg19[%c1_146, %c0_147] : memref<2x5xf32, #tpu.memory_space<vmem>>, vector<1x5xf32>
    tpu.vector_store %arg19[%c1_146, %c0_147], %392 {strides = array<i32>} : memref<2x5xf32, #tpu.memory_space<vmem>>, vector<1x5xf32>,
    return
  }
  func.func @transform_0(%arg0: i32) -> (i32, i32) {
    %c0_i32 = arith.constant 0 : i32
    %c0_i32_0 = arith.constant 0 : i32
    %c0_i32_1 = arith.constant 0 : i32
    return %c0_i32, %c0_i32_0 : i32, i32
  }
  func.func @transform_1(%arg0: i32) -> (i32, i32) {
    %c0_i32 = arith.constant 0 : i32
    %c0_i32_0 = arith.constant 0 : i32
    %c0_i32_1 = arith.constant 0 : i32
    return %c0_i32, %c0_i32_0 : i32, i32
  }
  func.func @transform_2(%arg0: i32) -> (i32, i32) {
    %c0_i32 = arith.constant 0 : i32
    %c0_i32_0 = arith.constant 0 : i32
    %c0_i32_1 = arith.constant 0 : i32
    return %c0_i32, %c0_i32_0 : i32, i32
  }
  func.func @transform_3(%arg0: i32) -> (i32, i32) {
    %c0_i32 = arith.constant 0 : i32
    %c0_i32_0 = arith.constant 0 : i32
    %c0_i32_1 = arith.constant 0 : i32
    return %c0_i32, %c0_i32_0 : i32, i32
  }
  func.func @transform_4(%arg0: i32) -> (i32, i32, i32) {
    %c0_i32 = arith.constant 0 : i32
    %c0_i32_0 = arith.constant 0 : i32
    %c0_i32_1 = arith.constant 0 : i32
    %c0_i32_2 = arith.constant 0 : i32
    return %c0_i32, %c0_i32_0, %c0_i32_1 : i32, i32, i32
  }
  func.func @transform_5(%arg0: i32) -> (i32, i32) {
    %c0_i32 = arith.constant 0 : i32
    %c0_i32_0 = arith.constant 0 : i32
    %c0_i32_1 = arith.constant 0 : i32
    return %c0_i32, %c0_i32_0 : i32, i32
  }
  func.func @transform_6(%arg0: i32) -> (i32, i32, i32) {
    %c0_i32 = arith.constant 0 : i32
    %c0_i32_0 = arith.constant 0 : i32
    %c0_i32_1 = arith.constant 0 : i32
    %c0_i32_2 = arith.constant 0 : i32
    return %c0_i32, %c0_i32_0, %c0_i32_1 : i32, i32, i32
  }
  func.func @transform_7(%arg0: i32) -> (i32, i32) {
    %c0_i32 = arith.constant 0 : i32
    %c0_i32_0 = arith.constant 0 : i32
    %c0_i32_1 = arith.constant 0 : i32
    return %c0_i32, %c0_i32_0 : i32, i32
  }
  func.func @transform_8(%arg0: i32) -> (i32, i32) {
    %c0_i32 = arith.constant 0 : i32
    %c0_i32_0 = arith.constant 0 : i32
    %c0_i32_1 = arith.constant 0 : i32
    return %c0_i32, %c0_i32_0 : i32, i32
  }
  func.func @transform_9(%arg0: i32) -> (i32, i32) {
    %c0_i32 = arith.constant 0 : i32
    %c0_i32_0 = arith.constant 0 : i32
    %c0_i32_1 = arith.constant 0 : i32
    return %c0_i32, %c0_i32_0 : i32, i32
  }
  func.func @transform_10(%arg0: i32) -> (i32, i32, i32) {
    %c0_i32 = arith.constant 0 : i32
    %c0_i32_0 = arith.constant 0 : i32
    %c0_i32_1 = arith.constant 0 : i32
    %c0_i32_2 = arith.constant 0 : i32
    return %c0_i32, %c0_i32_0, %c0_i32_1 : i32, i32, i32
  }
  func.func @transform_11(%arg0: i32) -> (i32, i32) {
    %c0_i32 = arith.constant 0 : i32
    %c0_i32_0 = arith.constant 0 : i32
    %c0_i32_1 = arith.constant 0 : i32
    return %c0_i32, %c0_i32_0 : i32, i32
  }
  func.func @transform_12(%arg0: i32) -> (i32, i32, i32) {
    %c0_i32 = arith.constant 0 : i32
    %c0_i32_0 = arith.constant 0 : i32
    %c0_i32_1 = arith.constant 0 : i32
    %c0_i32_2 = arith.constant 0 : i32
    return %c0_i32, %c0_i32_0, %c0_i32_1 : i32, i32, i32
  }
  func.func @transform_13(%arg0: i32) -> (i32, i32) {
    %c0_i32 = arith.constant 0 : i32
    %c0_i32_0 = arith.constant 0 : i32
    %c0_i32_1 = arith.constant 0 : i32
    return %c0_i32, %c0_i32_0 : i32, i32
  }
  func.func @transform_14(%arg0: i32) -> (i32, i32) {
    %c0_i32 = arith.constant 0 : i32
    %c0_i32_0 = arith.constant 0 : i32
    %c0_i32_1 = arith.constant 0 : i32
    return %c0_i32, %c0_i32_0 : i32, i32
  }
  func.func @transform_15(%arg0: i32) -> (i32, i32) {
    %c0_i32 = arith.constant 0 : i32
    %c0_i32_0 = arith.constant 0 : i32
    %c0_i32_1 = arith.constant 0 : i32
    return %c0_i32, %c0_i32_0 : i32, i32
  }
  func.func @transform_16(%arg0: i32) -> (i32, i32) {
    %c0_i32 = arith.constant 0 : i32
    %c0_i32_0 = arith.constant 0 : i32
    %c0_i32_1 = arith.constant 0 : i32
    return %c0_i32, %c0_i32_0 : i32, i32
  }
  func.func @transform_17(%arg0: i32) -> (i32, i32) {
    %c0_i32 = arith.constant 0 : i32
    %c0_i32_0 = arith.constant 0 : i32
    %c0_i32_1 = arith.constant 0 : i32
    return %c0_i32, %c0_i32_0 : i32, i32
  }
  func.func @transform_18(%arg0: i32) -> (i32, i32) {
    %c0_i32 = arith.constant 0 : i32
    %c0_i32_0 = arith.constant 0 : i32
    %c0_i32_1 = arith.constant 0 : i32
    return %c0_i32, %c0_i32_0 : i32, i32
  }
}

</mosaic_0001>

<llo_original>
// kernel: eq.8
$region0: #{eq.8}
  %s0 = inlined_call_operand.vmem [shape: s32[2,8], index: 0, kind: input, shape index: {}]
  %s1 = inlined_call_operand.vmem [shape: s32[16], index: 1, kind: output, shape index: {}]
  $region1: #{eq.8} parent=0
    #allocation0 [shape = 'u8[4096]{0}', space=vmem, size = 0x1000, scoped, tag = 'scoped mem for output reshape']
    #allocation1 [shape = 'u8[4096]{0}', space=vmem, size = 0x1000, scoped, tag = 'scoped mem for input reshape']
    %s3 = ssub.s32 4, 1
    %v4 = vld [vmem:[%s0] sm:%s3]
    %5 = vst [vmem:[#allocation1] sm:%s3] %v4
    %v6 = vld [vmem:[#allocation1] sm:$0x1]
    %vm7 = vcmask 64512
    %8 = vst.msk [vmem:[#allocation0] sm:$0x1] %vm7, %v6
    %s9 = scalar_lea.vmem [#allocation1], 1
    %v10 = vld [vmem:[%s9] sm:$0x1]
    %11 = vrot.lane.b32.xlu0 %v10, 8
    %v12 = vpop.permute.xlu0 %11
    %vm13 = vcmask 130112
    %14 = vst.msk [vmem:[#allocation0] sm:$0x1] %vm13, %v12
    %s16 = ssub.s32 2, 1
    %v17 = vld [vmem:[#allocation0] sm:%s16]
    %s19 = ssub.s32 2, 1
    %20 = vst [vmem:[%s1] sm:%s19] %v17

// kernel: transformer_forward.1
$region0: #{transformer_forward.1}
  #allocation0 [shape = 'u32[]', space=smem, size = 0x4, offset = 0x4, fixed_abs, tag = 'smem constant byte address 0x4 - core index']
  #allocation1 [shape = 'u32[72,128]{1,0:T(1,128)}', space=vmem, size = 0x9000, scoped, tag = 'internal scratch']
  %s0 = inlined_call_operand.vmem [shape: f32[16,4], index: 0, kind: input, shape index: {}]
  %s1 = inlined_call_operand.vmem [shape: f32[4,32], index: 1, kind: input, shape index: {}]
  %s2 = inlined_call_operand.vmem [shape: f32[16,32], index: 2, kind: input, shape index: {}]
  %s3 = inlined_call_operand.vmem [shape: f32[16,16], index: 3, kind: input, shape index: {}]
  %s4 = inlined_call_operand.vmem [shape: f32[2,32,96], index: 4, kind: input, shape index: {}]
  %s5 = inlined_call_operand.vmem [shape: f32[2,96], index: 5, kind: input, shape index: {}]
  %s6 = inlined_call_operand.vmem [shape: f32[2,32,32], index: 6, kind: input, shape index: {}]
  %s7 = inlined_call_operand.vmem [shape: f32[2,32], index: 7, kind: input, shape index: {}]
  %s8 = inlined_call_operand.vmem [shape: f32[2,32], index: 8, kind: input, shape index: {}]
  %s9 = inlined_call_operand.vmem [shape: f32[2,32], index: 9, kind: input, shape index: {}]
  %s10 = inlined_call_operand.vmem [shape: f32[2,32,128], index: 10, kind: input, shape index: {}]
  %s11 = inlined_call_operand.vmem [shape: f32[2,128], index: 11, kind: input, shape index: {}]
  %s12 = inlined_call_operand.vmem [shape: f32[2,128,32], index: 12, kind: input, shape index: {}]
  %s13 = inlined_call_operand.vmem [shape: f32[2,32], index: 13, kind: input, shape index: {}]
  %s14 = inlined_call_operand.vmem [shape: f32[2,32], index: 14, kind: input, shape index: {}]
  %s15 = inlined_call_operand.vmem [shape: f32[2,32], index: 15, kind: input, shape index: {}]
  %s16 = inlined_call_operand.vmem [shape: f32[256,5], index: 16, kind: input, shape index: {}]
  %s17 = inlined_call_operand.vmem [shape: f32[1,5], index: 17, kind: input, shape index: {}]
  %s18 = inlined_call_operand.hbm [shape: f32[2,5], index: 18, kind: output, shape index: {}]
  %s19 = sld [smem:[#allocation0]]
  $region82: #{transformer_forward.1} parent=0
    _
  %s21 = ssub.s32 1, %s19
  %s22 = scalar_select 0, %s21, %s19
  $region1: #{transformer_forward.1} parent=0
    #allocation2 [shape = 'u8[1024]{0}', space=vmem, size = 0x400, scoped, tag = 'output window, operand 0, single buffered']
    #allocation3 [shape = 's32[1]{0}', space=sflag, size = 0x4, scoped, tag = 'scoped memory for transformer_forward.1']
    %23 = vsyncpa [#allocation3], 0
    // Predicated region
    $region2: #{transformer_forward.1} parent=1 // pred_check
      _
    $region3: #{transformer_forward.1} parent=1 // pred_check_branch
      %25 = sbr.rel (0) target = $region5
    $region4: #{transformer_forward.1} parent=1 // pred_region
      _
    $region5: #{transformer_forward.1} parent=1 // pred_fallthru
      _
    // Predicated region
    $region6: #{transformer_forward.1} parent=1 // pred_check
      _
    $region7: #{transformer_forward.1} parent=1 // pred_check_branch
      %27 = sbr.rel (0) target = $region9
    $region8: #{transformer_forward.1} parent=1 // pred_region
      _
    $region9: #{transformer_forward.1} parent=1 // pred_fallthru
      _
    // Predicated region
    $region10: #{transformer_forward.1} parent=1 // pred_check
      _
    $region11: #{transformer_forward.1} parent=1 // pred_check_branch
      %29 = sbr.rel (0) target = $region13
    $region12: #{transformer_forward.1} parent=1 // pred_region
      _
    $region13: #{transformer_forward.1} parent=1 // pred_fallthru
      _
    // Predicated region
    $region14: #{transformer_forward.1} parent=1 // pred_check
      _
    $region15: #{transformer_forward.1} parent=1 // pred_check_branch
      %31 = sbr.rel (0) target = $region17
    $region16: #{transformer_forward.1} parent=1 // pred_region
      _
    $region17: #{transformer_forward.1} parent=1 // pred_fallthru
      _
    // Predicated region
    $region18: #{transformer_forward.1} parent=1 // pred_check
      _
    $region19: #{transformer_forward.1} parent=1 // pred_check_branch
      %33 = sbr.rel (0) target = $region21
    $region20: #{transformer_forward.1} parent=1 // pred_region
      _
    $region21: #{transformer_forward.1} parent=1 // pred_fallthru
      _
    // Predicated region
    $region22: #{transformer_forward.1} parent=1 // pred_check
      _
    $region23: #{transformer_forward.1} parent=1 // pred_check_branch
      %35 = sbr.rel (0) target = $region25
    $region24: #{transformer_forward.1} parent=1 // pred_region
      _
    $region25: #{transformer_forward.1} parent=1 // pred_fallthru
      _
    // Predicated region
    $region26: #{transformer_forward.1} parent=1 // pred_check
      _
    $region27: #{transformer_forward.1} parent=1 // pred_check_branch
      %37 = sbr.rel (0) target = $region29
    $region28: #{transformer_forward.1} parent=1 // pred_region
      _
    $region29: #{transformer_forward.1} parent=1 // pred_fallthru
      _
    // Predicated region
    $region30: #{transformer_forward.1} parent=1 // pred_check
      _
    $region31: #{transformer_forward.1} parent=1 // pred_check_branch
      %39 = sbr.rel (0) target = $region33
    $region32: #{transformer_forward.1} parent=1 // pred_region
      _
    $region33: #{transformer_forward.1} parent=1 // pred_fallthru
      _
    // Predicated region
    $region34: #{transformer_forward.1} parent=1 // pred_check
      _
    $region35: #{transformer_forward.1} parent=1 // pred_check_branch
      %41 = sbr.rel (0) target = $region37
    $region36: #{transformer_forward.1} parent=1 // pred_region
      _
    $region37: #{transformer_forward.1} parent=1 // pred_fallthru
      _
    // Predicated region
    $region38: #{transformer_forward.1} parent=1 // pred_check
      _
    $region39: #{transformer_forward.1} parent=1 // pred_check_branch
      %43 = sbr.rel (0) target = $region41
    $region40: #{transformer_forward.1} parent=1 // pred_region
      _
    $region41: #{transformer_forward.1} parent=1 // pred_fallthru
      _
    // Predicated region
    $region42: #{transformer_forward.1} parent=1 // pred_check
      _
    $region43: #{transformer_forward.1} parent=1 // pred_check_branch
      %45 = sbr.rel (0) target = $region45
    $region44: #{transformer_forward.1} parent=1 // pred_region
      _
    $region45: #{transformer_forward.1} parent=1 // pred_fallthru
      _
    // Predicated region
    $region46: #{transformer_forward.1} parent=1 // pred_check
      _
    $region47: #{transformer_forward.1} parent=1 // pred_check_branch
      %47 = sbr.rel (0) target = $region49
    $region48: #{transformer_forward.1} parent=1 // pred_region
      _
    $region49: #{transformer_forward.1} parent=1 // pred_fallthru
      _
    // Predicated region
    $region50: #{transformer_forward.1} parent=1 // pred_check
      _
    $region51: #{transformer_forward.1} parent=1 // pred_check_branch
      %49 = sbr.rel (0) target = $region53
    $region52: #{transformer_forward.1} parent=1 // pred_region
      _
    $region53: #{transformer_forward.1} parent=1 // pred_fallthru
      _
    // Predicated region
    $region54: #{transformer_forward.1} parent=1 // pred_check
      _
    $region55: #{transformer_forward.1} parent=1 // pred_check_branch
      %51 = sbr.rel (0) target = $region57
    $region56: #{transformer_forward.1} parent=1 // pred_region
      _
    $region57: #{transformer_forward.1} parent=1 // pred_fallthru
      _
    // Predicated region
    $region58: #{transformer_forward.1} parent=1 // pred_check
      _
    $region59: #{transformer_forward.1} parent=1 // pred_check_branch
      %53 = sbr.rel (0) target = $region61
    $region60: #{transformer_forward.1} parent=1 // pred_region
      _
    $region61: #{transformer_forward.1} parent=1 // pred_fallthru
      _
    // Predicated region
    $region62: #{transformer_forward.1} parent=1 // pred_check
      _
    $region63: #{transformer_forward.1} parent=1 // pred_check_branch
      %55 = sbr.rel (0) target = $region65
    $region64: #{transformer_forward.1} parent=1 // pred_region
      _
    $region65: #{transformer_forward.1} parent=1 // pred_fallthru
      _
    // Predicated region
    $region66: #{transformer_forward.1} parent=1 // pred_check
      _
    $region67: #{transformer_forward.1} parent=1 // pred_check_branch
      %57 = sbr.rel (0) target = $region69
    $region68: #{transformer_forward.1} parent=1 // pred_region
      _
    $region69: #{transformer_forward.1} parent=1 // pred_fallthru
      _
    // Predicated region
    $region70: #{transformer_forward.1} parent=1 // pred_check
      _
    $region71: #{transformer_forward.1} parent=1 // pred_check_branch
      %59 = sbr.rel (0) target = $region73
    $region72: #{transformer_forward.1} parent=1 // pred_region
      _
    $region73: #{transformer_forward.1} parent=1 // pred_fallthru
      _
    %v60 = vld [vmem:[%s0] sm:$0xff]
    %v61 = vld [vmem:[%s0 + $0x8] sm:$0xff]
    %v62 = vld [vmem:[%s1] sm:$0xf]
    %v63 = vld [vmem:[%s2] sm:$0xff]
    %v64 = vld [vmem:[%s2 + $0x8] sm:$0xff]
    %vm65 = vcmask 31744
    %v67 = vsel %vm65, %v60, 0
    %v70 = vsel %vm65, %v61, 0
    %vm72 = vcmask 1043456
    %v74 = vsel %vm72, %v62, 0
    %76 = vmatpush.msra.mxu0 0.0
    %77 = vmatpush.msra.mxu0 0.0
    %78 = vmatpush.msra.mxu0 0.0
    %79 = vmatpush.msra.mxu0 0.0
    %80 = vmatpush.msra.mxu0 0.0
    %81 = vmatpush.msra.mxu0 0.0
    %82 = vmatpush.msra.mxu0 0.0
    %83 = vmatpush.msra.mxu0 0.0
    %84 = vmatpush.msra.mxu0 0.0
    %85 = vmatpush.msra.mxu0 0.0
    %86 = vmatpush.msra.mxu0 0.0
    %87 = vmatpush.msra.mxu0 0.0
    %88 = vmatpush.msra.mxu0 0.0
    %89 = vmatpush.msra.mxu0 0.0
    %90 = vmatpush.msra.mxu0 0.0
    %91 = vmatpush.msra.mxu0 %v74
    %92 = vmatmul.f32.gmra.mxu0 %v67
    %v93 = vpop.f32.mrf.mxu0
    %v94 = vadd.f32 %v63, %v93
    %95 = vmatmul.f32.gmra.mxu0 %v70
    %v96 = vpop.f32.mrf.mxu0
    %v97 = vadd.f32 %v64, %v96
    %98 = vdwg.mxu0
    %v99 = vld [vmem:[%s3] sm:$0xff]
    %v100 = vld [vmem:[%s3 + $0x8] sm:$0xff]
    %v101 = vld [vmem:[%s5] sm:$0x3]
    %v102 = vld [vmem:[%s7] sm:$0x3]
    %v103 = vld [vmem:[%s11] sm:$0x3]
    %v104 = vld [vmem:[%s13] sm:$0x3]
    %v105 = vld [vmem:[%s8] sm:$0x3]
    %v106 = vld [vmem:[%s9] sm:$0x3]
    %v107 = vld [vmem:[%s14] sm:$0x3]
    %v108 = vld [vmem:[%s15] sm:$0x3]
    %v109 = vld [vmem:[%s4] sm:$0xff]
    %v110 = vld [vmem:[%s4 + $0x8] sm:$0xff]
    %v111 = vld [vmem:[%s4 + $0x10] sm:$0xff]
    %v112 = vld [vmem:[%s4 + $0x18] sm:$0xff]
    %v113 = vperm.slane %v101, 0
    %vm114 = vcmask 261120
    %v116 = vsel %vm114, %v94, 0
    %v119 = vsel %vm114, %v97, 0
    %121 = vmatpush.msra.mxu0 0.0
    %122 = vmatpush.msra.mxu0 0.0
    %123 = vmatpush.msra.mxu0 0.0
    %124 = vmatpush.msra.mxu0 0.0
    %125 = vmatpush.msra.mxu0 0.0
    %126 = vmatpush.msra.mxu0 0.0
    %127 = vmatpush.msra.mxu0 0.0
    %128 = vmatpush.msra.mxu0 0.0
    %129 = vmatpush.msra.mxu0 0.0
    %130 = vmatpush.msra.mxu0 0.0
    %131 = vmatpush.msra.mxu0 0.0
    %132 = vmatpush.msra.mxu0 0.0
    %133 = vmatpush.msra.mxu0 %v112
    %134 = vmatpush.msra.mxu0 %v111
    %135 = vmatpush.msra.mxu0 %v110
    %136 = vmatpush.msra.mxu0 %v109
    %137 = vmatmul.f32.gmra.mxu0 %v116
    %v138 = vpop.f32.mrf.mxu0
    %v139 = vadd.f32 %v113, %v138
    %140 = vmatmul.f32.gmra.mxu0 %v119
    %v141 = vpop.f32.mrf.mxu0
    %v142 = vadd.f32 %v113, %v141
    %143 = vdwg.mxu0
    %v144 = vld [vmem:[%s6] sm:$0xff]
    %v145 = vld [vmem:[%s6 + $0x8] sm:$0xff]
    %v146 = vld [vmem:[%s6 + $0x10] sm:$0xff]
    %v147 = vld [vmem:[%s6 + $0x18] sm:$0xff]
    %150 = vrot.lane.b32.xlu0 %v139, 96
    %v151 = vpop.permute.xlu0 %150
    %152 = vrot.lane.b32.xlu0 %v142, 96
    %v153 = vpop.permute.xlu0 %152
    %vm154 = vcmask 64512
    %v155 = vsel %vm154, %v139, 0
    %v157 = vsel %vm154, %v142, 0
    %v159 = vsel %vm154, %v151, 0
    %v161 = vsel %vm154, %v153, 0
    %163 = vmatpush.xpose.msra.mxu0 0.0
    %164 = vmatpush.xpose.msra.mxu0 0.0
    %165 = vmatpush.xpose.msra.mxu0 0.0
    %166 = vmatpush.xpose.msra.mxu0 0.0
    %167 = vmatpush.xpose.msra.mxu0 0.0
    %168 = vmatpush.xpose.msra.mxu0 0.0
    %169 = vmatpush.xpose.msra.mxu0 0.0
    %170 = vmatpush.xpose.msra.mxu0 0.0
    %171 = vmatpush.xpose.msra.mxu0 0.0
    %172 = vmatpush.xpose.msra.mxu0 0.0
    %173 = vmatpush.xpose.msra.mxu0 0.0
    %174 = vmatpush.xpose.msra.mxu0 0.0
    %175 = vmatpush.xpose.msra.mxu0 0.0
    %176 = vmatpush.xpose.msra.mxu0 0.0
    %177 = vmatpush.xpose.msra.mxu0 %v161
    %178 = vmatpush.xpose.msra.mxu0 %v159
    %179 = vmatmul.f32.gmra.mxu0 %v155
    %v180 = vpop.f32.mrf.mxu0
    %v181 = vadd.f32 0.0, %v180
    %182 = vmatmul.f32.gmra.mxu0 %v157
    %v183 = vpop.f32.mrf.mxu0
    %v184 = vadd.f32 0.0, %v183
    %185 = vdwg.mxu0
    %v186 = vmul.f32 %v181, 0.35355338
    %v187 = vmul.f32 %v184, 0.35355338
    %v188 = vadd.f32 %v186, %v99
    %v189 = vadd.f32 %v187, %v100
    %vm190 = vcmask 130048
    %v191 = vsel %vm190, %v188, -inf
    %192 = vmax.xlane.f32.xlu0 %v191
    %v193 = vpop.xlane.xlu0 %192
    %v194 = vsel %vm190, %v189, -inf
    %195 = vmax.xlane.f32.xlu0 %v194
    %v196 = vpop.xlane.xlu0 %195
    %v197 = vsub.f32 %v188, %v193
    %v198 = vsub.f32 %v189, %v196
    %v199 = vmul.f32 %v197, 1.442695
    %v200 = vpow.pop %v199
    %v201 = vmul.f32 %v198, 1.442695
    %v202 = vpow.pop %v201
    %v203 = vsel %vm190, %v200, 0.0
    %204 = vadd.xlane.f32.xlu0 %v203
    %v205 = vpop.xlane.xlu0 %204
    %v206 = vsel %vm190, %v202, 0.0
    %207 = vadd.xlane.f32.xlu0 %v206
    %v208 = vpop.xlane.xlu0 %207
    %v209 = vrcp.pop %v205
    %v210 = vrcp.pop %v208
    %v211 = vmul.f32 %v200, %v209
    %v212 = vmul.f32 %v202, %v210
    %213 = vrot.lane.b32.xlu0 %v139, 64
    %v214 = vpop.permute.xlu0 %213
    %215 = vrot.lane.b32.xlu0 %v142, 64
    %v216 = vpop.permute.xlu0 %215
    %v220 = vsel %vm190, %v211, 0
    %v223 = vsel %vm190, %v212, 0
    %225 = vmatpush.msra.mxu0 0.0
    %226 = vmatpush.msra.mxu0 0.0
    %227 = vmatpush.msra.mxu0 0.0
    %228 = vmatpush.msra.mxu0 0.0
    %229 = vmatpush.msra.mxu0 0.0
    %230 = vmatpush.msra.mxu0 0.0
    %231 = vmatpush.msra.mxu0 0.0
    %232 = vmatpush.msra.mxu0 0.0
    %233 = vmatpush.msra.mxu0 0.0
    %234 = vmatpush.msra.mxu0 0.0
    %235 = vmatpush.msra.mxu0 0.0
    %236 = vmatpush.msra.mxu0 0.0
    %237 = vmatpush.msra.mxu0 0.0
    %238 = vmatpush.msra.mxu0 0.0
    %239 = vmatpush.msra.mxu0 %v216
    %240 = vmatpush.msra.mxu0 %v214
    %241 = vmatmul.f32.gmra.mxu0 %v220
    %v242 = vpop.f32.mrf.mxu0
    %v243 = vadd.f32 0.0, %v242
    %244 = vmatmul.f32.gmra.mxu0 %v223
    %v245 = vpop.f32.mrf.mxu0
    %v246 = vadd.f32 0.0, %v245
    %247 = vdwg.mxu0
    %248 = vrot.lane.b32.xlu0 %v139, 120
    %v249 = vpop.permute.xlu0 %248
    %250 = vrot.lane.b32.xlu0 %v142, 120
    %v251 = vpop.permute.xlu0 %250
    %252 = vrot.lane.b32.xlu0 %v139, 88
    %v253 = vpop.permute.xlu0 %252
    %254 = vrot.lane.b32.xlu0 %v142, 88
    %v255 = vpop.permute.xlu0 %254
    %v256 = vsel %vm154, %v249, 0
    %v258 = vsel %vm154, %v251, 0
    %v260 = vsel %vm154, %v253, 0
    %v262 = vsel %vm154, %v255, 0
    %264 = vmatpush.xpose.msra.mxu0 0.0
    %265 = vmatpush.xpose.msra.mxu0 0.0
    %266 = vmatpush.xpose.msra.mxu0 0.0
    %267 = vmatpush.xpose.msra.mxu0 0.0
    %268 = vmatpush.xpose.msra.mxu0 0.0
    %269 = vmatpush.xpose.msra.mxu0 0.0
    %270 = vmatpush.xpose.msra.mxu0 0.0
    %271 = vmatpush.xpose.msra.mxu0 0.0
    %272 = vmatpush.xpose.msra.mxu0 0.0
    %273 = vmatpush.xpose.msra.mxu0 0.0
    %274 = vmatpush.xpose.msra.mxu0 0.0
    %275 = vmatpush.xpose.msra.mxu0 0.0
    %276 = vmatpush.xpose.msra.mxu0 0.0
    %277 = vmatpush.xpose.msra.mxu0 0.0
    %278 = vmatpush.xpose.msra.mxu0 %v262
    %279 = vmatpush.xpose.msra.mxu0 %v260
    %280 = vmatmul.f32.gmra.mxu0 %v256
    %v281 = vpop.f32.mrf.mxu0
    %v282 = vadd.f32 0.0, %v281
    %283 = vmatmul.f32.gmra.mxu0 %v258
    %v284 = vpop.f32.mrf.mxu0
    %v285 = vadd.f32 0.0, %v284
    %286 = vdwg.mxu0
    %v287 = vmul.f32 %v282, 0.35355338
    %v288 = vmul.f32 %v285, 0.35355338
    %v289 = vadd.f32 %v287, %v99
    %v290 = vadd.f32 %v288, %v100
    %v291 = vsel %vm190, %v289, -inf
    %292 = vmax.xlane.f32.xlu0 %v291
    %v293 = vpop.xlane.xlu0 %292
    %v294 = vsel %vm190, %v290, -inf
    %295 = vmax.xlane.f32.xlu0 %v294
    %v296 = vpop.xlane.xlu0 %295
    %v297 = vsub.f32 %v289, %v293
    %v298 = vsub.f32 %v290, %v296
    %v299 = vmul.f32 %v297, 1.442695
    %v300 = vpow.pop %v299
    %v301 = vmul.f32 %v298, 1.442695
    %v302 = vpow.pop %v301
    %v303 = vsel %vm190, %v300, 0.0
    %304 = vadd.xlane.f32.xlu0 %v303
    %v305 = vpop.xlane.xlu0 %304
    %v306 = vsel %vm190, %v302, 0.0
    %307 = vadd.xlane.f32.xlu0 %v306
    %v308 = vpop.xlane.xlu0 %307
    %v309 = vrcp.pop %v305
    %v310 = vrcp.pop %v308
    %v311 = vmul.f32 %v300, %v309
    %v312 = vmul.f32 %v302, %v310
    %313 = vrot.lane.b32.xlu0 %v139, 56
    %v314 = vpop.permute.xlu0 %313
    %315 = vrot.lane.b32.xlu0 %v142, 56
    %v316 = vpop.permute.xlu0 %315
    %v320 = vsel %vm190, %v311, 0
    %v323 = vsel %vm190, %v312, 0
    %325 = vmatpush.msra.mxu0 0.0
    %326 = vmatpush.msra.mxu0 0.0
    %327 = vmatpush.msra.mxu0 0.0
    %328 = vmatpush.msra.mxu0 0.0
    %329 = vmatpush.msra.mxu0 0.0
    %330 = vmatpush.msra.mxu0 0.0
    %331 = vmatpush.msra.mxu0 0.0
    %332 = vmatpush.msra.mxu0 0.0
    %333 = vmatpush.msra.mxu0 0.0
    %334 = vmatpush.msra.mxu0 0.0
    %335 = vmatpush.msra.mxu0 0.0
    %336 = vmatpush.msra.mxu0 0.0
    %337 = vmatpush.msra.mxu0 0.0
    %338 = vmatpush.msra.mxu0 0.0
    %339 = vmatpush.msra.mxu0 %v316
    %340 = vmatpush.msra.mxu0 %v314
    %341 = vmatmul.f32.gmra.mxu0 %v320
    %v342 = vpop.f32.mrf.mxu0
    %v343 = vadd.f32 0.0, %v342
    %344 = vmatmul.f32.gmra.mxu0 %v323
    %v345 = vpop.f32.mrf.mxu0
    %v346 = vadd.f32 0.0, %v345
    %347 = vdwg.mxu0
    %v349 = vsel %vm154, %v343, 0
    %v352 = vsel %vm154, %v346, 0
    %354 = vmatpush.msra.mxu0 0.0
    %355 = vmatpush.msra.mxu0 0.0
    %356 = vmatpush.msra.mxu0 0.0
    %357 = vmatpush.msra.mxu0 0.0
    %358 = vmatpush.msra.mxu0 0.0
    %359 = vmatpush.msra.mxu0 0.0
    %360 = vmatpush.msra.mxu0 0.0
    %361 = vmatpush.msra.mxu0 0.0
    %362 = vmatpush.msra.mxu0 0.0
    %363 = vmatpush.msra.mxu0 0.0
    %364 = vmatpush.msra.mxu0 0.0
    %365 = vmatpush.msra.mxu0 0.0
    %366 = vmatpush.msra.mxu0 0.0
    %367 = vmatpush.msra.mxu0 0.0
    %368 = vmatpush.msra.mxu0 0.0
    %369 = vmatpush.msra.mxu0 %v145
    %370 = vmatmul.f32.gmra.mxu0 %v349
    %v371 = vpop.f32.mrf.mxu0
    %v372 = vadd.f32 0.0, %v371
    %373 = vmatmul.f32.gmra.mxu0 %v352
    %v374 = vpop.f32.mrf.mxu0
    %v375 = vadd.f32 0.0, %v374
    %376 = vdwg.mxu0
    %v378 = vsel %vm154, %v243, 0
    %v381 = vsel %vm154, %v246, 0
    %383 = vmatpush.msra.mxu0 0.0
    %384 = vmatpush.msra.mxu0 0.0
    %385 = vmatpush.msra.mxu0 0.0
    %386 = vmatpush.msra.mxu0 0.0
    %387 = vmatpush.msra.mxu0 0.0
    %388 = vmatpush.msra.mxu0 0.0
    %389 = vmatpush.msra.mxu0 0.0
    %390 = vmatpush.msra.mxu0 0.0
    %391 = vmatpush.msra.mxu0 0.0
    %392 = vmatpush.msra.mxu0 0.0
    %393 = vmatpush.msra.mxu0 0.0
    %394 = vmatpush.msra.mxu0 0.0
    %395 = vmatpush.msra.mxu0 0.0
    %396 = vmatpush.msra.mxu0 0.0
    %397 = vmatpush.msra.mxu0 0.0
    %398 = vmatpush.msra.mxu0 %v144
    %399 = vmatmul.f32.gmra.mxu0 %v378
    %v400 = vpop.f32.mrf.mxu0
    %v401 = vadd.f32 %v372, %v400
    %402 = vmatmul.f32.gmra.mxu0 %v381
    %v403 = vpop.f32.mrf.mxu0
    %v404 = vadd.f32 %v375, %v403
    %405 = vdwg.mxu0
    %406 = vrot.lane.b32.xlu0 %v139, 112
    %v407 = vpop.permute.xlu0 %406
    %408 = vrot.lane.b32.xlu0 %v142, 112
    %v409 = vpop.permute.xlu0 %408
    %410 = vrot.lane.b32.xlu0 %v139, 80
    %v411 = vpop.permute.xlu0 %410
    %412 = vrot.lane.b32.xlu0 %v142, 80
    %v413 = vpop.permute.xlu0 %412
    %v414 = vsel %vm154, %v407, 0
    %v416 = vsel %vm154, %v409, 0
    %v418 = vsel %vm154, %v411, 0
    %v420 = vsel %vm154, %v413, 0
    %422 = vmatpush.xpose.msra.mxu0 0.0
    %423 = vmatpush.xpose.msra.mxu0 0.0
    %424 = vmatpush.xpose.msra.mxu0 0.0
    %425 = vmatpush.xpose.msra.mxu0 0.0
    %426 = vmatpush.xpose.msra.mxu0 0.0
    %427 = vmatpush.xpose.msra.mxu0 0.0
    %428 = vmatpush.xpose.msra.mxu0 0.0
    %429 = vmatpush.xpose.msra.mxu0 0.0
    %430 = vmatpush.xpose.msra.mxu0 0.0
    %431 = vmatpush.xpose.msra.mxu0 0.0
    %432 = vmatpush.xpose.msra.mxu0 0.0
    %433 = vmatpush.xpose.msra.mxu0 0.0
    %434 = vmatpush.xpose.msra.mxu0 0.0
    %435 = vmatpush.xpose.msra.mxu0 0.0
    %436 = vmatpush.xpose.msra.mxu0 %v420
    %437 = vmatpush.xpose.msra.mxu0 %v418
    %438 = vmatmul.f32.gmra.mxu0 %v414
    %v439 = vpop.f32.mrf.mxu0
    %v440 = vadd.f32 0.0, %v439
    %441 = vmatmul.f32.gmra.mxu0 %v416
    %v442 = vpop.f32.mrf.mxu0
    %v443 = vadd.f32 0.0, %v442
    %444 = vdwg.mxu0
    %v445 = vmul.f32 %v440, 0.35355338
    %v446 = vmul.f32 %v443, 0.35355338
    %v447 = vadd.f32 %v445, %v99
    %v448 = vadd.f32 %v446, %v100
    %v449 = vsel %vm190, %v447, -inf
    %450 = vmax.xlane.f32.xlu0 %v449
    %v451 = vpop.xlane.xlu0 %450
    %v452 = vsel %vm190, %v448, -inf
    %453 = vmax.xlane.f32.xlu0 %v452
    %v454 = vpop.xlane.xlu0 %453
    %v455 = vsub.f32 %v447, %v451
    %v456 = vsub.f32 %v448, %v454
    %v457 = vmul.f32 %v455, 1.442695
    %v458 = vpow.pop %v457
    %v459 = vmul.f32 %v456, 1.442695
    %v460 = vpow.pop %v459
    %v461 = vsel %vm190, %v458, 0.0
    %462 = vadd.xlane.f32.xlu0 %v461
    %v463 = vpop.xlane.xlu0 %462
    %v464 = vsel %vm190, %v460, 0.0
    %465 = vadd.xlane.f32.xlu0 %v464
    %v466 = vpop.xlane.xlu0 %465
    %v467 = vrcp.pop %v463
    %v468 = vrcp.pop %v466
    %v469 = vmul.f32 %v458, %v467
    %v470 = vmul.f32 %v460, %v468
    %471 = vrot.lane.b32.xlu0 %v139, 48
    %v472 = vpop.permute.xlu0 %471
    %473 = vrot.lane.b32.xlu0 %v142, 48
    %v474 = vpop.permute.xlu0 %473
    %v478 = vsel %vm190, %v469, 0
    %v481 = vsel %vm190, %v470, 0
    %483 = vmatpush.msra.mxu0 0.0
    %484 = vmatpush.msra.mxu0 0.0
    %485 = vmatpush.msra.mxu0 0.0
    %486 = vmatpush.msra.mxu0 0.0
    %487 = vmatpush.msra.mxu0 0.0
    %488 = vmatpush.msra.mxu0 0.0
    %489 = vmatpush.msra.mxu0 0.0
    %490 = vmatpush.msra.mxu0 0.0
    %491 = vmatpush.msra.mxu0 0.0
    %492 = vmatpush.msra.mxu0 0.0
    %493 = vmatpush.msra.mxu0 0.0
    %494 = vmatpush.msra.mxu0 0.0
    %495 = vmatpush.msra.mxu0 0.0
    %496 = vmatpush.msra.mxu0 0.0
    %497 = vmatpush.msra.mxu0 %v474
    %498 = vmatpush.msra.mxu0 %v472
    %499 = vmatmul.f32.gmra.mxu0 %v478
    %v500 = vpop.f32.mrf.mxu0
    %v501 = vadd.f32 0.0, %v500
    %502 = vmatmul.f32.gmra.mxu0 %v481
    %v503 = vpop.f32.mrf.mxu0
    %v504 = vadd.f32 0.0, %v503
    %505 = vdwg.mxu0
    %v507 = vsel %vm154, %v501, 0
    %v510 = vsel %vm154, %v504, 0
    %512 = vmatpush.msra.mxu0 0.0
    %513 = vmatpush.msra.mxu0 0.0
    %514 = vmatpush.msra.mxu0 0.0
    %515 = vmatpush.msra.mxu0 0.0
    %516 = vmatpush.msra.mxu0 0.0
    %517 = vmatpush.msra.mxu0 0.0
    %518 = vmatpush.msra.mxu0 0.0
    %519 = vmatpush.msra.mxu0 0.0
    %520 = vmatpush.msra.mxu0 0.0
    %521 = vmatpush.msra.mxu0 0.0
    %522 = vmatpush.msra.mxu0 0.0
    %523 = vmatpush.msra.mxu0 0.0
    %524 = vmatpush.msra.mxu0 0.0
    %525 = vmatpush.msra.mxu0 0.0
    %526 = vmatpush.msra.mxu0 0.0
    %527 = vmatpush.msra.mxu0 %v146
    %528 = vmatmul.f32.gmra.mxu0 %v507
    %v529 = vpop.f32.mrf.mxu0
    %v530 = vadd.f32 0.0, %v529
    %531 = vmatmul.f32.gmra.mxu0 %v510
    %v532 = vpop.f32.mrf.mxu0
    %v533 = vadd.f32 0.0, %v532
    %534 = vdwg.mxu0
    %v535 = vadd.f32 %v401, %v530
    %v536 = vadd.f32 %v404, %v533
    %537 = vrot.lane.b32.xlu0 %v139, 104
    %v538 = vpop.permute.xlu0 %537
    %539 = vrot.lane.b32.xlu0 %v142, 104
    %v540 = vpop.permute.xlu0 %539
    %541 = vrot.lane.b32.xlu0 %v139, 72
    %v542 = vpop.permute.xlu0 %541
    %543 = vrot.lane.b32.xlu0 %v142, 72
    %v544 = vpop.permute.xlu0 %543
    %v545 = vsel %vm154, %v538, 0
    %v547 = vsel %vm154, %v540, 0
    %v549 = vsel %vm154, %v542, 0
    %v551 = vsel %vm154, %v544, 0
    %553 = vmatpush.xpose.msra.mxu0 0.0
    %554 = vmatpush.xpose.msra.mxu0 0.0
    %555 = vmatpush.xpose.msra.mxu0 0.0
    %556 = vmatpush.xpose.msra.mxu0 0.0
    %557 = vmatpush.xpose.msra.mxu0 0.0
    %558 = vmatpush.xpose.msra.mxu0 0.0
    %559 = vmatpush.xpose.msra.mxu0 0.0
    %560 = vmatpush.xpose.msra.mxu0 0.0
    %561 = vmatpush.xpose.msra.mxu0 0.0
    %562 = vmatpush.xpose.msra.mxu0 0.0
    %563 = vmatpush.xpose.msra.mxu0 0.0
    %564 = vmatpush.xpose.msra.mxu0 0.0
    %565 = vmatpush.xpose.msra.mxu0 0.0
    %566 = vmatpush.xpose.msra.mxu0 0.0
    %567 = vmatpush.xpose.msra.mxu0 %v551
    %568 = vmatpush.xpose.msra.mxu0 %v549
    %569 = vmatmul.f32.gmra.mxu0 %v545
    %v570 = vpop.f32.mrf.mxu0
    %v571 = vadd.f32 0.0, %v570
    %572 = vmatmul.f32.gmra.mxu0 %v547
    %v573 = vpop.f32.mrf.mxu0
    %v574 = vadd.f32 0.0, %v573
    %575 = vdwg.mxu0
    %v576 = vmul.f32 %v571, 0.35355338
    %v577 = vmul.f32 %v574, 0.35355338
    %v578 = vadd.f32 %v576, %v99
    %v579 = vadd.f32 %v577, %v100
    %v580 = vsel %vm190, %v578, -inf
    %581 = vmax.xlane.f32.xlu0 %v580
    %v582 = vpop.xlane.xlu0 %581
    %v583 = vsel %vm190, %v579, -inf
    %584 = vmax.xlane.f32.xlu0 %v583
    %v585 = vpop.xlane.xlu0 %584
    %v586 = vsub.f32 %v578, %v582
    %v587 = vsub.f32 %v579, %v585
    %v588 = vmul.f32 %v586, 1.442695
    %v589 = vpow.pop %v588
    %v590 = vmul.f32 %v587, 1.442695
    %v591 = vpow.pop %v590
    %v592 = vsel %vm190, %v589, 0.0
    %593 = vadd.xlane.f32.xlu0 %v592
    %v594 = vpop.xlane.xlu0 %593
    %v595 = vsel %vm190, %v591, 0.0
    %596 = vadd.xlane.f32.xlu0 %v595
    %v597 = vpop.xlane.xlu0 %596
    %v598 = vrcp.pop %v594
    %v599 = vrcp.pop %v597
    %v600 = vmul.f32 %v589, %v598
    %v601 = vmul.f32 %v591, %v599
    %602 = vrot.lane.b32.xlu0 %v139, 40
    %v603 = vpop.permute.xlu0 %602
    %604 = vrot.lane.b32.xlu0 %v142, 40
    %v605 = vpop.permute.xlu0 %604
    %v609 = vsel %vm190, %v600, 0
    %v612 = vsel %vm190, %v601, 0
    %614 = vmatpush.msra.mxu0 0.0
    %615 = vmatpush.msra.mxu0 0.0
    %616 = vmatpush.msra.mxu0 0.0
    %617 = vmatpush.msra.mxu0 0.0
    %618 = vmatpush.msra.mxu0 0.0
    %619 = vmatpush.msra.mxu0 0.0
    %620 = vmatpush.msra.mxu0 0.0
    %621 = vmatpush.msra.mxu0 0.0
    %622 = vmatpush.msra.mxu0 0.0
    %623 = vmatpush.msra.mxu0 0.0
    %624 = vmatpush.msra.mxu0 0.0
    %625 = vmatpush.msra.mxu0 0.0
    %626 = vmatpush.msra.mxu0 0.0
    %627 = vmatpush.msra.mxu0 0.0
    %628 = vmatpush.msra.mxu0 %v605
    %629 = vmatpush.msra.mxu0 %v603
    %630 = vmatmul.f32.gmra.mxu0 %v609
    %v631 = vpop.f32.mrf.mxu0
    %v632 = vadd.f32 0.0, %v631
    %633 = vmatmul.f32.gmra.mxu0 %v612
    %v634 = vpop.f32.mrf.mxu0
    %v635 = vadd.f32 0.0, %v634
    %636 = vdwg.mxu0
    %v638 = vsel %vm154, %v632, 0
    %v641 = vsel %vm154, %v635, 0
    %643 = vmatpush.msra.mxu0 0.0
    %644 = vmatpush.msra.mxu0 0.0
    %645 = vmatpush.msra.mxu0 0.0
    %646 = vmatpush.msra.mxu0 0.0
    %647 = vmatpush.msra.mxu0 0.0
    %648 = vmatpush.msra.mxu0 0.0
    %649 = vmatpush.msra.mxu0 0.0
    %650 = vmatpush.msra.mxu0 0.0
    %651 = vmatpush.msra.mxu0 0.0
    %652 = vmatpush.msra.mxu0 0.0
    %653 = vmatpush.msra.mxu0 0.0
    %654 = vmatpush.msra.mxu0 0.0
    %655 = vmatpush.msra.mxu0 0.0
    %656 = vmatpush.msra.mxu0 0.0
    %657 = vmatpush.msra.mxu0 0.0
    %658 = vmatpush.msra.mxu0 %v147
    %659 = vmatmul.f32.gmra.mxu0 %v638
    %v660 = vpop.f32.mrf.mxu0
    %v661 = vadd.f32 0.0, %v660
    %662 = vmatmul.f32.gmra.mxu0 %v641
    %v663 = vpop.f32.mrf.mxu0
    %v664 = vadd.f32 0.0, %v663
    %665 = vdwg.mxu0
    %v666 = vadd.f32 %v535, %v661
    %v667 = vadd.f32 %v536, %v664
    %v668 = vperm.slane %v102, 0
    %v669 = vadd.f32 %v666, %v668
    %v670 = vadd.f32 %v667, %v668
    %v671 = vadd.f32 %v94, %v669
    %v672 = vadd.f32 %v97, %v670
    %v673 = vsel %vm114, %v671, 0.0
    %674 = vadd.xlane.f32.xlu0 %v673
    %v675 = vpop.xlane.xlu0 %674
    %v676 = vsel %vm114, %v672, 0.0
    %677 = vadd.xlane.f32.xlu0 %v676
    %v678 = vpop.xlane.xlu0 %677
    %v679 = vrcp.pop 32.0
    %v680 = vmul.f32 32.0, %v679
    %v681 = vsub.f32 1.0, %v680
    %v682 = vmul.f32 %v679, %v681
    %v683 = vadd.f32 %v679, %v682
    %vm684 = vweird.f32 %v679
    %v685 = vsel %vm684, %v679, %v683
    %v686 = vmul.f32 %v675, %v685
    %v687 = vmul.f32 %v678, %v685
    %v688 = vsub.f32 %v671, %v686
    %v689 = vsub.f32 %v672, %v687
    %v690 = vmul.f32 %v688, %v688
    %v691 = vmul.f32 %v689, %v689
    %v692 = vsel %vm114, %v690, 0.0
    %693 = vadd.xlane.f32.xlu0 %v692
    %v694 = vpop.xlane.xlu0 %693
    %v695 = vsel %vm114, %v691, 0.0
    %696 = vadd.xlane.f32.xlu0 %v695
    %v697 = vpop.xlane.xlu0 %696
    %v698 = vmul.f32 %v694, %v685
    %v699 = vmul.f32 %v697, %v685
    %v700 = vadd.f32 %v698, 1e-05
    %v701 = vadd.f32 %v699, 1e-05
    %v702 = vrsqrt.pop %v700
    %v703 = vmul.f32 %v702, %v700
    %v704 = vmul.f32 %v703, %v702
    %v705 = vmul.f32 0.5, %v704
    %v706 = vsub.f32 1.5, %v705
    %v707 = vmul.f32 %v702, %v706
    %vm708 = vweird.f32 %v700
    %vm709 = vweird.f32 %v702
    %vm710 = vmor %vm708, %vm709
    %v711 = vsel %vm710, %v702, %v707
    %v712 = vrsqrt.pop %v701
    %v713 = vmul.f32 %v712, %v701
    %v714 = vmul.f32 %v713, %v712
    %v715 = vmul.f32 0.5, %v714
    %v716 = vsub.f32 1.5, %v715
    %v717 = vmul.f32 %v712, %v716
    %vm718 = vweird.f32 %v701
    %vm719 = vweird.f32 %v712
    %vm720 = vmor %vm718, %vm719
    %v721 = vsel %vm720, %v712, %v717
    %v722 = vmul.f32 %v688, %v711
    %v723 = vmul.f32 %v689, %v721
    %v724 = vperm.slane %v105, 0
    %v725 = vmul.f32 %v722, %v724
    %v726 = vmul.f32 %v723, %v724
    %v727 = vperm.slane %v106, 0
    %v728 = vadd.f32 %v725, %v727
    %v729 = vadd.f32 %v726, %v727
    %v730 = vld [vmem:[%s10] sm:$0xff]
    %v731 = vld [vmem:[%s10 + $0x8] sm:$0xff]
    %v732 = vld [vmem:[%s10 + $0x10] sm:$0xff]
    %v733 = vld [vmem:[%s10 + $0x18] sm:$0xff]
    %v734 = vperm.slane %v103, 0
    %v736 = vsel %vm114, %v728, 0
    %v739 = vsel %vm114, %v729, 0
    %741 = vmatpush.msra.mxu0 0.0
    %742 = vmatpush.msra.mxu0 0.0
    %743 = vmatpush.msra.mxu0 0.0
    %744 = vmatpush.msra.mxu0 0.0
    %745 = vmatpush.msra.mxu0 0.0
    %746 = vmatpush.msra.mxu0 0.0
    %747 = vmatpush.msra.mxu0 0.0
    %748 = vmatpush.msra.mxu0 0.0
    %749 = vmatpush.msra.mxu0 0.0
    %750 = vmatpush.msra.mxu0 0.0
    %751 = vmatpush.msra.mxu0 0.0
    %752 = vmatpush.msra.mxu0 0.0
    %753 = vmatpush.msra.mxu0 %v733
    %754 = vmatpush.msra.mxu0 %v732
    %755 = vmatpush.msra.mxu0 %v731
    %756 = vmatpush.msra.mxu0 %v730
    %757 = vmatmul.f32.gmra.mxu0 %v736
    %v758 = vpop.f32.mrf.mxu0
    %v759 = vadd.f32 %v734, %v758
    %760 = vmatmul.f32.gmra.mxu0 %v739
    %v761 = vpop.f32.mrf.mxu0
    %v762 = vadd.f32 %v734, %v761
    %763 = vdwg.mxu0
    %v764 = vmax.f32 %v759, 0.0
    %v765 = vmax.f32 %v762, 0.0
    %v766 = vld [vmem:[%s12] sm:$0xff]
    %v767 = vld [vmem:[%s12 + $0x8] sm:$0xff]
    %v768 = vld [vmem:[%s12 + $0x10] sm:$0xff]
    %v769 = vld [vmem:[%s12 + $0x18] sm:$0xff]
    %v770 = vld [vmem:[%s12 + $0x20] sm:$0xff]
    %v771 = vld [vmem:[%s12 + $0x28] sm:$0xff]
    %v772 = vld [vmem:[%s12 + $0x30] sm:$0xff]
    %v773 = vld [vmem:[%s12 + $0x38] sm:$0xff]
    %v774 = vld [vmem:[%s12 + $0x40] sm:$0xff]
    %v775 = vld [vmem:[%s12 + $0x48] sm:$0xff]
    %v776 = vld [vmem:[%s12 + $0x50] sm:$0xff]
    %v777 = vld [vmem:[%s12 + $0x58] sm:$0xff]
    %v778 = vld [vmem:[%s12 + $0x60] sm:$0xff]
    %v779 = vld [vmem:[%s12 + $0x68] sm:$0xff]
    %v780 = vld [vmem:[%s12 + $0x70] sm:$0xff]
    %v781 = vld [vmem:[%s12 + $0x78] sm:$0xff]
    %v782 = vperm.slane %v104, 0
    %783 = vmatpush.msra.mxu0 %v781
    %784 = vmatpush.msra.mxu0 %v780
    %785 = vmatpush.msra.mxu0 %v779
    %786 = vmatpush.msra.mxu0 %v778
    %787 = vmatpush.msra.mxu0 %v777
    %788 = vmatpush.msra.mxu0 %v776
    %789 = vmatpush.msra.mxu0 %v775
    %790 = vmatpush.msra.mxu0 %v774
    %791 = vmatpush.msra.mxu0 %v773
    %792 = vmatpush.msra.mxu0 %v772
    %793 = vmatpush.msra.mxu0 %v771
    %794 = vmatpush.msra.mxu0 %v770
    %795 = vmatpush.msra.mxu0 %v769
    %796 = vmatpush.msra.mxu0 %v768
    %797 = vmatpush.msra.mxu0 %v767
    %798 = vmatpush.msra.mxu0 %v766
    %799 = vmatmul.f32.gmra.mxu0 %v764
    %v800 = vpop.f32.mrf.mxu0
    %v801 = vadd.f32 %v782, %v800
    %802 = vmatmul.f32.gmra.mxu0 %v765
    %v803 = vpop.f32.mrf.mxu0
    %v804 = vadd.f32 %v782, %v803
    %805 = vdwg.mxu0
    %v806 = vadd.f32 %v728, %v801
    %v807 = vadd.f32 %v729, %v804
    %v808 = vsel %vm114, %v806, 0.0
    %809 = vadd.xlane.f32.xlu0 %v808
    %v810 = vpop.xlane.xlu0 %809
    %v811 = vsel %vm114, %v807, 0.0
    %812 = vadd.xlane.f32.xlu0 %v811
    %v813 = vpop.xlane.xlu0 %812
    %v814 = vmul.f32 %v810, %v685
    %v815 = vmul.f32 %v813, %v685
    %v816 = vsub.f32 %v806, %v814
    %v817 = vsub.f32 %v807, %v815
    %v818 = vmul.f32 %v816, %v816
    %v819 = vmul.f32 %v817, %v817
    %v820 = vsel %vm114, %v818, 0.0
    %821 = vadd.xlane.f32.xlu0 %v820
    %v822 = vpop.xlane.xlu0 %821
    %v823 = vsel %vm114, %v819, 0.0
    %824 = vadd.xlane.f32.xlu0 %v823
    %v825 = vpop.xlane.xlu0 %824
    %v826 = vmul.f32 %v822, %v685
    %v827 = vmul.f32 %v825, %v685
    %v828 = vadd.f32 %v826, 1e-05
    %v829 = vadd.f32 %v827, 1e-05
    %v830 = vrsqrt.pop %v828
    %v831 = vmul.f32 %v830, %v828
    %v832 = vmul.f32 %v831, %v830
    %v833 = vmul.f32 0.5, %v832
    %v834 = vsub.f32 1.5, %v833
    %v835 = vmul.f32 %v830, %v834
    %vm836 = vweird.f32 %v828
    %vm837 = vweird.f32 %v830
    %vm838 = vmor %vm836, %vm837
    %v839 = vsel %vm838, %v830, %v835
    %v840 = vrsqrt.pop %v829
    %v841 = vmul.f32 %v840, %v829
    %v842 = vmul.f32 %v841, %v840
    %v843 = vmul.f32 0.5, %v842
    %v844 = vsub.f32 1.5, %v843
    %v845 = vmul.f32 %v840, %v844
    %vm846 = vweird.f32 %v829
    %vm847 = vweird.f32 %v840
    %vm848 = vmor %vm846, %vm847
    %v849 = vsel %vm848, %v840, %v845
    %v850 = vmul.f32 %v816, %v839
    %v851 = vmul.f32 %v817, %v849
    %v852 = vperm.slane %v107, 0
    %v853 = vmul.f32 %v850, %v852
    %v854 = vmul.f32 %v851, %v852
    %v855 = vperm.slane %v108, 0
    %v856 = vadd.f32 %v853, %v855
    %v857 = vadd.f32 %v854, %v855
    %s858 = scalar_lea.vmem %s4, 32
    %v859 = vld [vmem:[%s858] sm:$0xff]
    %v860 = vld [vmem:[%s858 + $0x8] sm:$0xff]
    %v861 = vld [vmem:[%s858 + $0x10] sm:$0xff]
    %v862 = vld [vmem:[%s858 + $0x18] sm:$0xff]
    %v863 = vperm.slane %v101, 1
    %v865 = vsel %vm114, %v856, 0
    %v868 = vsel %vm114, %v857, 0
    %870 = vmatpush.msra.mxu0 0.0
    %871 = vmatpush.msra.mxu0 0.0
    %872 = vmatpush.msra.mxu0 0.0
    %873 = vmatpush.msra.mxu0 0.0
    %874 = vmatpush.msra.mxu0 0.0
    %875 = vmatpush.msra.mxu0 0.0
    %876 = vmatpush.msra.mxu0 0.0
    %877 = vmatpush.msra.mxu0 0.0
    %878 = vmatpush.msra.mxu0 0.0
    %879 = vmatpush.msra.mxu0 0.0
    %880 = vmatpush.msra.mxu0 0.0
    %881 = vmatpush.msra.mxu0 0.0
    %882 = vmatpush.msra.mxu0 %v862
    %883 = vmatpush.msra.mxu0 %v861
    %884 = vmatpush.msra.mxu0 %v860
    %885 = vmatpush.msra.mxu0 %v859
    %886 = vmatmul.f32.gmra.mxu0 %v865
    %v887 = vpop.f32.mrf.mxu0
    %v888 = vadd.f32 %v863, %v887
    %889 = vmatmul.f32.gmra.mxu0 %v868
    %v890 = vpop.f32.mrf.mxu0
    %v891 = vadd.f32 %v863, %v890
    %892 = vdwg.mxu0
    %s893 = scalar_lea.vmem %s6, 32
    %v894 = vld [vmem:[%s893] sm:$0xff]
    %v895 = vld [vmem:[%s893 + $0x8] sm:$0xff]
    %v896 = vld [vmem:[%s893 + $0x10] sm:$0xff]
    %v897 = vld [vmem:[%s893 + $0x18] sm:$0xff]
    %900 = vrot.lane.b32.xlu0 %v888, 96
    %v901 = vpop.permute.xlu0 %900
    %902 = vrot.lane.b32.xlu0 %v891, 96
    %v903 = vpop.permute.xlu0 %902
    %v904 = vsel %vm154, %v888, 0
    %v906 = vsel %vm154, %v891, 0
    %v908 = vsel %vm154, %v901, 0
    %v910 = vsel %vm154, %v903, 0
    %912 = vmatpush.xpose.msra.mxu0 0.0
    %913 = vmatpush.xpose.msra.mxu0 0.0
    %914 = vmatpush.xpose.msra.mxu0 0.0
    %915 = vmatpush.xpose.msra.mxu0 0.0
    %916 = vmatpush.xpose.msra.mxu0 0.0
    %917 = vmatpush.xpose.msra.mxu0 0.0
    %918 = vmatpush.xpose.msra.mxu0 0.0
    %919 = vmatpush.xpose.msra.mxu0 0.0
    %920 = vmatpush.xpose.msra.mxu0 0.0
    %921 = vmatpush.xpose.msra.mxu0 0.0
    %922 = vmatpush.xpose.msra.mxu0 0.0
    %923 = vmatpush.xpose.msra.mxu0 0.0
    %924 = vmatpush.xpose.msra.mxu0 0.0
    %925 = vmatpush.xpose.msra.mxu0 0.0
    %926 = vmatpush.xpose.msra.mxu0 %v910
    %927 = vmatpush.xpose.msra.mxu0 %v908
    %928 = vmatmul.f32.gmra.mxu0 %v904
    %v929 = vpop.f32.mrf.mxu0
    %v930 = vadd.f32 0.0, %v929
    %931 = vmatmul.f32.gmra.mxu0 %v906
    %v932 = vpop.f32.mrf.mxu0
    %v933 = vadd.f32 0.0, %v932
    %934 = vdwg.mxu0
    %v935 = vmul.f32 %v930, 0.35355338
    %v936 = vmul.f32 %v933, 0.35355338
    %v937 = vadd.f32 %v935, %v99
    %v938 = vadd.f32 %v936, %v100
    %v939 = vsel %vm190, %v937, -inf
    %940 = vmax.xlane.f32.xlu0 %v939
    %v941 = vpop.xlane.xlu0 %940
    %v942 = vsel %vm190, %v938, -inf
    %943 = vmax.xlane.f32.xlu0 %v942
    %v944 = vpop.xlane.xlu0 %943
    %v945 = vsub.f32 %v937, %v941
    %v946 = vsub.f32 %v938, %v944
    %v947 = vmul.f32 %v945, 1.442695
    %v948 = vpow.pop %v947
    %v949 = vmul.f32 %v946, 1.442695
    %v950 = vpow.pop %v949
    %v951 = vsel %vm190, %v948, 0.0
    %952 = vadd.xlane.f32.xlu0 %v951
    %v953 = vpop.xlane.xlu0 %952
    %v954 = vsel %vm190, %v950, 0.0
    %955 = vadd.xlane.f32.xlu0 %v954
    %v956 = vpop.xlane.xlu0 %955
    %v957 = vrcp.pop %v953
    %v958 = vrcp.pop %v956
    %v959 = vmul.f32 %v948, %v957
    %v960 = vmul.f32 %v950, %v958
    %961 = vrot.lane.b32.xlu0 %v888, 64
    %v962 = vpop.permute.xlu0 %961
    %963 = vrot.lane.b32.xlu0 %v891, 64
    %v964 = vpop.permute.xlu0 %963
    %v968 = vsel %vm190, %v959, 0
    %v971 = vsel %vm190, %v960, 0
    %973 = vmatpush.msra.mxu0 0.0
    %974 = vmatpush.msra.mxu0 0.0
    %975 = vmatpush.msra.mxu0 0.0
    %976 = vmatpush.msra.mxu0 0.0
    %977 = vmatpush.msra.mxu0 0.0
    %978 = vmatpush.msra.mxu0 0.0
    %979 = vmatpush.msra.mxu0 0.0
    %980 = vmatpush.msra.mxu0 0.0
    %981 = vmatpush.msra.mxu0 0.0
    %982 = vmatpush.msra.mxu0 0.0
    %983 = vmatpush.msra.mxu0 0.0
    %984 = vmatpush.msra.mxu0 0.0
    %985 = vmatpush.msra.mxu0 0.0
    %986 = vmatpush.msra.mxu0 0.0
    %987 = vmatpush.msra.mxu0 %v964
    %988 = vmatpush.msra.mxu0 %v962
    %989 = vmatmul.f32.gmra.mxu0 %v968
    %v990 = vpop.f32.mrf.mxu0
    %v991 = vadd.f32 0.0, %v990
    %992 = vmatmul.f32.gmra.mxu0 %v971
    %v993 = vpop.f32.mrf.mxu0
    %v994 = vadd.f32 0.0, %v993
    %995 = vdwg.mxu0
    %996 = vrot.lane.b32.xlu0 %v888, 120
    %v997 = vpop.permute.xlu0 %996
    %998 = vrot.lane.b32.xlu0 %v891, 120
    %v999 = vpop.permute.xlu0 %998
    %1000 = vrot.lane.b32.xlu0 %v888, 88
    %v1001 = vpop.permute.xlu0 %1000
    %1002 = vrot.lane.b32.xlu0 %v891, 88
    %v1003 = vpop.permute.xlu0 %1002
    %v1004 = vsel %vm154, %v997, 0
    %v1006 = vsel %vm154, %v999, 0
    %v1008 = vsel %vm154, %v1001, 0
    %v1010 = vsel %vm154, %v1003, 0
    %1012 = vmatpush.xpose.msra.mxu0 0.0
    %1013 = vmatpush.xpose.msra.mxu0 0.0
    %1014 = vmatpush.xpose.msra.mxu0 0.0
    %1015 = vmatpush.xpose.msra.mxu0 0.0
    %1016 = vmatpush.xpose.msra.mxu0 0.0
    %1017 = vmatpush.xpose.msra.mxu0 0.0
    %1018 = vmatpush.xpose.msra.mxu0 0.0
    %1019 = vmatpush.xpose.msra.mxu0 0.0
    %1020 = vmatpush.xpose.msra.mxu0 0.0
    %1021 = vmatpush.xpose.msra.mxu0 0.0
    %1022 = vmatpush.xpose.msra.mxu0 0.0
    %1023 = vmatpush.xpose.msra.mxu0 0.0
    %1024 = vmatpush.xpose.msra.mxu0 0.0
    %1025 = vmatpush.xpose.msra.mxu0 0.0
    %1026 = vmatpush.xpose.msra.mxu0 %v1010
    %1027 = vmatpush.xpose.msra.mxu0 %v1008
    %1028 = vmatmul.f32.gmra.mxu0 %v1004
    %v1029 = vpop.f32.mrf.mxu0
    %v1030 = vadd.f32 0.0, %v1029
    %1031 = vmatmul.f32.gmra.mxu0 %v1006
    %v1032 = vpop.f32.mrf.mxu0
    %v1033 = vadd.f32 0.0, %v1032
    %1034 = vdwg.mxu0
    %v1035 = vmul.f32 %v1030, 0.35355338
    %v1036 = vmul.f32 %v1033, 0.35355338
    %v1037 = vadd.f32 %v1035, %v99
    %v1038 = vadd.f32 %v1036, %v100
    %v1039 = vsel %vm190, %v1037, -inf
    %1040 = vmax.xlane.f32.xlu0 %v1039
    %v1041 = vpop.xlane.xlu0 %1040
    %v1042 = vsel %vm190, %v1038, -inf
    %1043 = vmax.xlane.f32.xlu0 %v1042
    %v1044 = vpop.xlane.xlu0 %1043
    %v1045 = vsub.f32 %v1037, %v1041
    %v1046 = vsub.f32 %v1038, %v1044
    %v1047 = vmul.f32 %v1045, 1.442695
    %v1048 = vpow.pop %v1047
    %v1049 = vmul.f32 %v1046, 1.442695
    %v1050 = vpow.pop %v1049
    %v1051 = vsel %vm190, %v1048, 0.0
    %1052 = vadd.xlane.f32.xlu0 %v1051
    %v1053 = vpop.xlane.xlu0 %1052
    %v1054 = vsel %vm190, %v1050, 0.0
    %1055 = vadd.xlane.f32.xlu0 %v1054
    %v1056 = vpop.xlane.xlu0 %1055
    %v1057 = vrcp.pop %v1053
    %v1058 = vrcp.pop %v1056
    %v1059 = vmul.f32 %v1048, %v1057
    %v1060 = vmul.f32 %v1050, %v1058
    %1061 = vrot.lane.b32.xlu0 %v888, 56
    %v1062 = vpop.permute.xlu0 %1061
    %1063 = vrot.lane.b32.xlu0 %v891, 56
    %v1064 = vpop.permute.xlu0 %1063
    %v1068 = vsel %vm190, %v1059, 0
    %v1071 = vsel %vm190, %v1060, 0
    %1073 = vmatpush.msra.mxu0 0.0
    %1074 = vmatpush.msra.mxu0 0.0
    %1075 = vmatpush.msra.mxu0 0.0
    %1076 = vmatpush.msra.mxu0 0.0
    %1077 = vmatpush.msra.mxu0 0.0
    %1078 = vmatpush.msra.mxu0 0.0
    %1079 = vmatpush.msra.mxu0 0.0
    %1080 = vmatpush.msra.mxu0 0.0
    %1081 = vmatpush.msra.mxu0 0.0
    %1082 = vmatpush.msra.mxu0 0.0
    %1083 = vmatpush.msra.mxu0 0.0
    %1084 = vmatpush.msra.mxu0 0.0
    %1085 = vmatpush.msra.mxu0 0.0
    %1086 = vmatpush.msra.mxu0 0.0
    %1087 = vmatpush.msra.mxu0 %v1064
    %1088 = vmatpush.msra.mxu0 %v1062
    %1089 = vmatmul.f32.gmra.mxu0 %v1068
    %v1090 = vpop.f32.mrf.mxu0
    %v1091 = vadd.f32 0.0, %v1090
    %1092 = vmatmul.f32.gmra.mxu0 %v1071
    %v1093 = vpop.f32.mrf.mxu0
    %v1094 = vadd.f32 0.0, %v1093
    %1095 = vdwg.mxu0
    %v1097 = vsel %vm154, %v1091, 0
    %v1100 = vsel %vm154, %v1094, 0
    %1102 = vmatpush.msra.mxu0 0.0
    %1103 = vmatpush.msra.mxu0 0.0
    %1104 = vmatpush.msra.mxu0 0.0
    %1105 = vmatpush.msra.mxu0 0.0
    %1106 = vmatpush.msra.mxu0 0.0
    %1107 = vmatpush.msra.mxu0 0.0
    %1108 = vmatpush.msra.mxu0 0.0
    %1109 = vmatpush.msra.mxu0 0.0
    %1110 = vmatpush.msra.mxu0 0.0
    %1111 = vmatpush.msra.mxu0 0.0
    %1112 = vmatpush.msra.mxu0 0.0
    %1113 = vmatpush.msra.mxu0 0.0
    %1114 = vmatpush.msra.mxu0 0.0
    %1115 = vmatpush.msra.mxu0 0.0
    %1116 = vmatpush.msra.mxu0 0.0
    %1117 = vmatpush.msra.mxu0 %v895
    %1118 = vmatmul.f32.gmra.mxu0 %v1097
    %v1119 = vpop.f32.mrf.mxu0
    %v1120 = vadd.f32 0.0, %v1119
    %1121 = vmatmul.f32.gmra.mxu0 %v1100
    %v1122 = vpop.f32.mrf.mxu0
    %v1123 = vadd.f32 0.0, %v1122
    %1124 = vdwg.mxu0
    %v1126 = vsel %vm154, %v991, 0
    %v1129 = vsel %vm154, %v994, 0
    %1131 = vmatpush.msra.mxu0 0.0
    %1132 = vmatpush.msra.mxu0 0.0
    %1133 = vmatpush.msra.mxu0 0.0
    %1134 = vmatpush.msra.mxu0 0.0
    %1135 = vmatpush.msra.mxu0 0.0
    %1136 = vmatpush.msra.mxu0 0.0
    %1137 = vmatpush.msra.mxu0 0.0
    %1138 = vmatpush.msra.mxu0 0.0
    %1139 = vmatpush.msra.mxu0 0.0
    %1140 = vmatpush.msra.mxu0 0.0
    %1141 = vmatpush.msra.mxu0 0.0
    %1142 = vmatpush.msra.mxu0 0.0
    %1143 = vmatpush.msra.mxu0 0.0
    %1144 = vmatpush.msra.mxu0 0.0
    %1145 = vmatpush.msra.mxu0 0.0
    %1146 = vmatpush.msra.mxu0 %v894
    %1147 = vmatmul.f32.gmra.mxu0 %v1126
    %v1148 = vpop.f32.mrf.mxu0
    %v1149 = vadd.f32 %v1120, %v1148
    %1150 = vmatmul.f32.gmra.mxu0 %v1129
    %v1151 = vpop.f32.mrf.mxu0
    %v1152 = vadd.f32 %v1123, %v1151
    %1153 = vdwg.mxu0
    %1154 = vrot.lane.b32.xlu0 %v888, 112
    %v1155 = vpop.permute.xlu0 %1154
    %1156 = vrot.lane.b32.xlu0 %v891, 112
    %v1157 = vpop.permute.xlu0 %1156
    %1158 = vrot.lane.b32.xlu0 %v888, 80
    %v1159 = vpop.permute.xlu0 %1158
    %1160 = vrot.lane.b32.xlu0 %v891, 80
    %v1161 = vpop.permute.xlu0 %1160
    %v1162 = vsel %vm154, %v1155, 0
    %v1164 = vsel %vm154, %v1157, 0
    %v1166 = vsel %vm154, %v1159, 0
    %v1168 = vsel %vm154, %v1161, 0
    %1170 = vmatpush.xpose.msra.mxu0 0.0
    %1171 = vmatpush.xpose.msra.mxu0 0.0
    %1172 = vmatpush.xpose.msra.mxu0 0.0
    %1173 = vmatpush.xpose.msra.mxu0 0.0
    %1174 = vmatpush.xpose.msra.mxu0 0.0
    %1175 = vmatpush.xpose.msra.mxu0 0.0
    %1176 = vmatpush.xpose.msra.mxu0 0.0
    %1177 = vmatpush.xpose.msra.mxu0 0.0
    %1178 = vmatpush.xpose.msra.mxu0 0.0
    %1179 = vmatpush.xpose.msra.mxu0 0.0
    %1180 = vmatpush.xpose.msra.mxu0 0.0
    %1181 = vmatpush.xpose.msra.mxu0 0.0
    %1182 = vmatpush.xpose.msra.mxu0 0.0
    %1183 = vmatpush.xpose.msra.mxu0 0.0
    %1184 = vmatpush.xpose.msra.mxu0 %v1168
    %1185 = vmatpush.xpose.msra.mxu0 %v1166
    %1186 = vmatmul.f32.gmra.mxu0 %v1162
    %v1187 = vpop.f32.mrf.mxu0
    %v1188 = vadd.f32 0.0, %v1187
    %1189 = vmatmul.f32.gmra.mxu0 %v1164
    %v1190 = vpop.f32.mrf.mxu0
    %v1191 = vadd.f32 0.0, %v1190
    %1192 = vdwg.mxu0
    %v1193 = vmul.f32 %v1188, 0.35355338
    %v1194 = vmul.f32 %v1191, 0.35355338
    %v1195 = vadd.f32 %v1193, %v99
    %v1196 = vadd.f32 %v1194, %v100
    %v1197 = vsel %vm190, %v1195, -inf
    %1198 = vmax.xlane.f32.xlu0 %v1197
    %v1199 = vpop.xlane.xlu0 %1198
    %v1200 = vsel %vm190, %v1196, -inf
    %1201 = vmax.xlane.f32.xlu0 %v1200
    %v1202 = vpop.xlane.xlu0 %1201
    %v1203 = vsub.f32 %v1195, %v1199
    %v1204 = vsub.f32 %v1196, %v1202
    %v1205 = vmul.f32 %v1203, 1.442695
    %v1206 = vpow.pop %v1205
    %v1207 = vmul.f32 %v1204, 1.442695
    %v1208 = vpow.pop %v1207
    %v1209 = vsel %vm190, %v1206, 0.0
    %1210 = vadd.xlane.f32.xlu0 %v1209
    %v1211 = vpop.xlane.xlu0 %1210
    %v1212 = vsel %vm190, %v1208, 0.0
    %1213 = vadd.xlane.f32.xlu0 %v1212
    %v1214 = vpop.xlane.xlu0 %1213
    %v1215 = vrcp.pop %v1211
    %v1216 = vrcp.pop %v1214
    %v1217 = vmul.f32 %v1206, %v1215
    %v1218 = vmul.f32 %v1208, %v1216
    %1219 = vrot.lane.b32.xlu0 %v888, 48
    %v1220 = vpop.permute.xlu0 %1219
    %1221 = vrot.lane.b32.xlu0 %v891, 48
    %v1222 = vpop.permute.xlu0 %1221
    %v1226 = vsel %vm190, %v1217, 0
    %v1229 = vsel %vm190, %v1218, 0
    %1231 = vmatpush.msra.mxu0 0.0
    %1232 = vmatpush.msra.mxu0 0.0
    %1233 = vmatpush.msra.mxu0 0.0
    %1234 = vmatpush.msra.mxu0 0.0
    %1235 = vmatpush.msra.mxu0 0.0
    %1236 = vmatpush.msra.mxu0 0.0
    %1237 = vmatpush.msra.mxu0 0.0
    %1238 = vmatpush.msra.mxu0 0.0
    %1239 = vmatpush.msra.mxu0 0.0
    %1240 = vmatpush.msra.mxu0 0.0
    %1241 = vmatpush.msra.mxu0 0.0
    %1242 = vmatpush.msra.mxu0 0.0
    %1243 = vmatpush.msra.mxu0 0.0
    %1244 = vmatpush.msra.mxu0 0.0
    %1245 = vmatpush.msra.mxu0 %v1222
    %1246 = vmatpush.msra.mxu0 %v1220
    %1247 = vmatmul.f32.gmra.mxu0 %v1226
    %v1248 = vpop.f32.mrf.mxu0
    %v1249 = vadd.f32 0.0, %v1248
    %1250 = vmatmul.f32.gmra.mxu0 %v1229
    %v1251 = vpop.f32.mrf.mxu0
    %v1252 = vadd.f32 0.0, %v1251
    %1253 = vdwg.mxu0
    %v1255 = vsel %vm154, %v1249, 0
    %v1258 = vsel %vm154, %v1252, 0
    %1260 = vmatpush.msra.mxu0 0.0
    %1261 = vmatpush.msra.mxu0 0.0
    %1262 = vmatpush.msra.mxu0 0.0
    %1263 = vmatpush.msra.mxu0 0.0
    %1264 = vmatpush.msra.mxu0 0.0
    %1265 = vmatpush.msra.mxu0 0.0
    %1266 = vmatpush.msra.mxu0 0.0
    %1267 = vmatpush.msra.mxu0 0.0
    %1268 = vmatpush.msra.mxu0 0.0
    %1269 = vmatpush.msra.mxu0 0.0
    %1270 = vmatpush.msra.mxu0 0.0
    %1271 = vmatpush.msra.mxu0 0.0
    %1272 = vmatpush.msra.mxu0 0.0
    %1273 = vmatpush.msra.mxu0 0.0
    %1274 = vmatpush.msra.mxu0 0.0
    %1275 = vmatpush.msra.mxu0 %v896
    %1276 = vmatmul.f32.gmra.mxu0 %v1255
    %v1277 = vpop.f32.mrf.mxu0
    %v1278 = vadd.f32 0.0, %v1277
    %1279 = vmatmul.f32.gmra.mxu0 %v1258
    %v1280 = vpop.f32.mrf.mxu0
    %v1281 = vadd.f32 0.0, %v1280
    %1282 = vdwg.mxu0
    %v1283 = vadd.f32 %v1149, %v1278
    %v1284 = vadd.f32 %v1152, %v1281
    %1285 = vrot.lane.b32.xlu0 %v888, 104
    %v1286 = vpop.permute.xlu0 %1285
    %1287 = vrot.lane.b32.xlu0 %v891, 104
    %v1288 = vpop.permute.xlu0 %1287
    %1289 = vrot.lane.b32.xlu0 %v888, 72
    %v1290 = vpop.permute.xlu0 %1289
    %1291 = vrot.lane.b32.xlu0 %v891, 72
    %v1292 = vpop.permute.xlu0 %1291
    %v1293 = vsel %vm154, %v1286, 0
    %v1295 = vsel %vm154, %v1288, 0
    %v1297 = vsel %vm154, %v1290, 0
    %v1299 = vsel %vm154, %v1292, 0
    %1301 = vmatpush.xpose.msra.mxu0 0.0
    %1302 = vmatpush.xpose.msra.mxu0 0.0
    %1303 = vmatpush.xpose.msra.mxu0 0.0
    %1304 = vmatpush.xpose.msra.mxu0 0.0
    %1305 = vmatpush.xpose.msra.mxu0 0.0
    %1306 = vmatpush.xpose.msra.mxu0 0.0
    %1307 = vmatpush.xpose.msra.mxu0 0.0
    %1308 = vmatpush.xpose.msra.mxu0 0.0
    %1309 = vmatpush.xpose.msra.mxu0 0.0
    %1310 = vmatpush.xpose.msra.mxu0 0.0
    %1311 = vmatpush.xpose.msra.mxu0 0.0
    %1312 = vmatpush.xpose.msra.mxu0 0.0
    %1313 = vmatpush.xpose.msra.mxu0 0.0
    %1314 = vmatpush.xpose.msra.mxu0 0.0
    %1315 = vmatpush.xpose.msra.mxu0 %v1299
    %1316 = vmatpush.xpose.msra.mxu0 %v1297
    %1317 = vmatmul.f32.gmra.mxu0 %v1293
    %v1318 = vpop.f32.mrf.mxu0
    %v1319 = vadd.f32 0.0, %v1318
    %1320 = vmatmul.f32.gmra.mxu0 %v1295
    %v1321 = vpop.f32.mrf.mxu0
    %v1322 = vadd.f32 0.0, %v1321
    %1323 = vdwg.mxu0
    %v1324 = vmul.f32 %v1319, 0.35355338
    %v1325 = vmul.f32 %v1322, 0.35355338
    %v1326 = vadd.f32 %v1324, %v99
    %v1327 = vadd.f32 %v1325, %v100
    %v1328 = vsel %vm190, %v1326, -inf
    %1329 = vmax.xlane.f32.xlu0 %v1328
    %v1330 = vpop.xlane.xlu0 %1329
    %v1331 = vsel %vm190, %v1327, -inf
    %1332 = vmax.xlane.f32.xlu0 %v1331
    %v1333 = vpop.xlane.xlu0 %1332
    %v1334 = vsub.f32 %v1326, %v1330
    %v1335 = vsub.f32 %v1327, %v1333
    %v1336 = vmul.f32 %v1334, 1.442695
    %v1337 = vpow.pop %v1336
    %v1338 = vmul.f32 %v1335, 1.442695
    %v1339 = vpow.pop %v1338
    %v1340 = vsel %vm190, %v1337, 0.0
    %1341 = vadd.xlane.f32.xlu0 %v1340
    %v1342 = vpop.xlane.xlu0 %1341
    %v1343 = vsel %vm190, %v1339, 0.0
    %1344 = vadd.xlane.f32.xlu0 %v1343
    %v1345 = vpop.xlane.xlu0 %1344
    %v1346 = vrcp.pop %v1342
    %v1347 = vrcp.pop %v1345
    %v1348 = vmul.f32 %v1337, %v1346
    %v1349 = vmul.f32 %v1339, %v1347
    %1350 = vrot.lane.b32.xlu0 %v888, 40
    %v1351 = vpop.permute.xlu0 %1350
    %1352 = vrot.lane.b32.xlu0 %v891, 40
    %v1353 = vpop.permute.xlu0 %1352
    %v1357 = vsel %vm190, %v1348, 0
    %v1360 = vsel %vm190, %v1349, 0
    %1362 = vmatpush.msra.mxu0 0.0
    %1363 = vmatpush.msra.mxu0 0.0
    %1364 = vmatpush.msra.mxu0 0.0
    %1365 = vmatpush.msra.mxu0 0.0
    %1366 = vmatpush.msra.mxu0 0.0
    %1367 = vmatpush.msra.mxu0 0.0
    %1368 = vmatpush.msra.mxu0 0.0
    %1369 = vmatpush.msra.mxu0 0.0
    %1370 = vmatpush.msra.mxu0 0.0
    %1371 = vmatpush.msra.mxu0 0.0
    %1372 = vmatpush.msra.mxu0 0.0
    %1373 = vmatpush.msra.mxu0 0.0
    %1374 = vmatpush.msra.mxu0 0.0
    %1375 = vmatpush.msra.mxu0 0.0
    %1376 = vmatpush.msra.mxu0 %v1353
    %1377 = vmatpush.msra.mxu0 %v1351
    %1378 = vmatmul.f32.gmra.mxu0 %v1357
    %v1379 = vpop.f32.mrf.mxu0
    %v1380 = vadd.f32 0.0, %v1379
    %1381 = vmatmul.f32.gmra.mxu0 %v1360
    %v1382 = vpop.f32.mrf.mxu0
    %v1383 = vadd.f32 0.0, %v1382
    %1384 = vdwg.mxu0
    %v1386 = vsel %vm154, %v1380, 0
    %v1389 = vsel %vm154, %v1383, 0
    %1391 = vmatpush.msra.mxu0 0.0
    %1392 = vmatpush.msra.mxu0 0.0
    %1393 = vmatpush.msra.mxu0 0.0
    %1394 = vmatpush.msra.mxu0 0.0
    %1395 = vmatpush.msra.mxu0 0.0
    %1396 = vmatpush.msra.mxu0 0.0
    %1397 = vmatpush.msra.mxu0 0.0
    %1398 = vmatpush.msra.mxu0 0.0
    %1399 = vmatpush.msra.mxu0 0.0
    %1400 = vmatpush.msra.mxu0 0.0
    %1401 = vmatpush.msra.mxu0 0.0
    %1402 = vmatpush.msra.mxu0 0.0
    %1403 = vmatpush.msra.mxu0 0.0
    %1404 = vmatpush.msra.mxu0 0.0
    %1405 = vmatpush.msra.mxu0 0.0
    %1406 = vmatpush.msra.mxu0 %v897
    %1407 = vmatmul.f32.gmra.mxu0 %v1386
    %v1408 = vpop.f32.mrf.mxu0
    %v1409 = vadd.f32 0.0, %v1408
    %1410 = vmatmul.f32.gmra.mxu0 %v1389
    %v1411 = vpop.f32.mrf.mxu0
    %v1412 = vadd.f32 0.0, %v1411
    %1413 = vdwg.mxu0
    %v1414 = vadd.f32 %v1283, %v1409
    %v1415 = vadd.f32 %v1284, %v1412
    %v1416 = vperm.slane %v102, 1
    %v1417 = vadd.f32 %v1414, %v1416
    %v1418 = vadd.f32 %v1415, %v1416
    %v1419 = vadd.f32 %v856, %v1417
    %v1420 = vadd.f32 %v857, %v1418
    %v1421 = vsel %vm114, %v1419, 0.0
    %1422 = vadd.xlane.f32.xlu0 %v1421
    %v1423 = vpop.xlane.xlu0 %1422
    %v1424 = vsel %vm114, %v1420, 0.0
    %1425 = vadd.xlane.f32.xlu0 %v1424
    %v1426 = vpop.xlane.xlu0 %1425
    %v1427 = vmul.f32 %v1423, %v685
    %v1428 = vmul.f32 %v1426, %v685
    %v1429 = vsub.f32 %v1419, %v1427
    %v1430 = vsub.f32 %v1420, %v1428
    %v1431 = vmul.f32 %v1429, %v1429
    %v1432 = vmul.f32 %v1430, %v1430
    %v1433 = vsel %vm114, %v1431, 0.0
    %1434 = vadd.xlane.f32.xlu0 %v1433
    %v1435 = vpop.xlane.xlu0 %1434
    %v1436 = vsel %vm114, %v1432, 0.0
    %1437 = vadd.xlane.f32.xlu0 %v1436
    %v1438 = vpop.xlane.xlu0 %1437
    %v1439 = vmul.f32 %v1435, %v685
    %v1440 = vmul.f32 %v1438, %v685
    %v1441 = vadd.f32 %v1439, 1e-05
    %v1442 = vadd.f32 %v1440, 1e-05
    %v1443 = vrsqrt.pop %v1441
    %v1444 = vmul.f32 %v1443, %v1441
    %v1445 = vmul.f32 %v1444, %v1443
    %v1446 = vmul.f32 0.5, %v1445
    %v1447 = vsub.f32 1.5, %v1446
    %v1448 = vmul.f32 %v1443, %v1447
    %vm1449 = vweird.f32 %v1441
    %vm1450 = vweird.f32 %v1443
    %vm1451 = vmor %vm1449, %vm1450
    %v1452 = vsel %vm1451, %v1443, %v1448
    %v1453 = vrsqrt.pop %v1442
    %v1454 = vmul.f32 %v1453, %v1442
    %v1455 = vmul.f32 %v1454, %v1453
    %v1456 = vmul.f32 0.5, %v1455
    %v1457 = vsub.f32 1.5, %v1456
    %v1458 = vmul.f32 %v1453, %v1457
    %vm1459 = vweird.f32 %v1442
    %vm1460 = vweird.f32 %v1453
    %vm1461 = vmor %vm1459, %vm1460
    %v1462 = vsel %vm1461, %v1453, %v1458
    %v1463 = vmul.f32 %v1429, %v1452
    %v1464 = vmul.f32 %v1430, %v1462
    %v1465 = vperm.slane %v105, 1
    %v1466 = vmul.f32 %v1463, %v1465
    %v1467 = vmul.f32 %v1464, %v1465
    %v1468 = vperm.slane %v106, 1
    %v1469 = vadd.f32 %v1466, %v1468
    %v1470 = vadd.f32 %v1467, %v1468
    %s1471 = scalar_lea.vmem %s10, 32
    %v1472 = vld [vmem:[%s1471] sm:$0xff]
    %v1473 = vld [vmem:[%s1471 + $0x8] sm:$0xff]
    %v1474 = vld [vmem:[%s1471 + $0x10] sm:$0xff]
    %v1475 = vld [vmem:[%s1471 + $0x18] sm:$0xff]
    %v1476 = vperm.slane %v103, 1
    %v1478 = vsel %vm114, %v1469, 0
    %v1481 = vsel %vm114, %v1470, 0
    %1483 = vmatpush.msra.mxu0 0.0
    %1484 = vmatpush.msra.mxu0 0.0
    %1485 = vmatpush.msra.mxu0 0.0
    %1486 = vmatpush.msra.mxu0 0.0
    %1487 = vmatpush.msra.mxu0 0.0
    %1488 = vmatpush.msra.mxu0 0.0
    %1489 = vmatpush.msra.mxu0 0.0
    %1490 = vmatpush.msra.mxu0 0.0
    %1491 = vmatpush.msra.mxu0 0.0
    %1492 = vmatpush.msra.mxu0 0.0
    %1493 = vmatpush.msra.mxu0 0.0
    %1494 = vmatpush.msra.mxu0 0.0
    %1495 = vmatpush.msra.mxu0 %v1475
    %1496 = vmatpush.msra.mxu0 %v1474
    %1497 = vmatpush.msra.mxu0 %v1473
    %1498 = vmatpush.msra.mxu0 %v1472
    %1499 = vmatmul.f32.gmra.mxu0 %v1478
    %v1500 = vpop.f32.mrf.mxu0
    %v1501 = vadd.f32 %v1476, %v1500
    %1502 = vmatmul.f32.gmra.mxu0 %v1481
    %v1503 = vpop.f32.mrf.mxu0
    %v1504 = vadd.f32 %v1476, %v1503
    %1505 = vdwg.mxu0
    %v1506 = vmax.f32 %v1501, 0.0
    %v1507 = vmax.f32 %v1504, 0.0
    %s1508 = scalar_lea.vmem %s12, 128
    %v1509 = vld [vmem:[%s1508] sm:$0xff]
    %v1510 = vld [vmem:[%s1508 + $0x8] sm:$0xff]
    %v1511 = vld [vmem:[%s1508 + $0x10] sm:$0xff]
    %v1512 = vld [vmem:[%s1508 + $0x18] sm:$0xff]
    %v1513 = vld [vmem:[%s1508 + $0x20] sm:$0xff]
    %v1514 = vld [vmem:[%s1508 + $0x28] sm:$0xff]
    %v1515 = vld [vmem:[%s1508 + $0x30] sm:$0xff]
    %v1516 = vld [vmem:[%s1508 + $0x38] sm:$0xff]
    %v1517 = vld [vmem:[%s1508 + $0x40] sm:$0xff]
    %v1518 = vld [vmem:[%s1508 + $0x48] sm:$0xff]
    %v1519 = vld [vmem:[%s1508 + $0x50] sm:$0xff]
    %v1520 = vld [vmem:[%s1508 + $0x58] sm:$0xff]
    %v1521 = vld [vmem:[%s1508 + $0x60] sm:$0xff]
    %v1522 = vld [vmem:[%s1508 + $0x68] sm:$0xff]
    %v1523 = vld [vmem:[%s1508 + $0x70] sm:$0xff]
    %v1524 = vld [vmem:[%s1508 + $0x78] sm:$0xff]
    %v1525 = vperm.slane %v104, 1
    %1526 = vmatpush.msra.mxu0 %v1524
    %1527 = vmatpush.msra.mxu0 %v1523
    %1528 = vmatpush.msra.mxu0 %v1522
    %1529 = vmatpush.msra.mxu0 %v1521
    %1530 = vmatpush.msra.mxu0 %v1520
    %1531 = vmatpush.msra.mxu0 %v1519
    %1532 = vmatpush.msra.mxu0 %v1518
    %1533 = vmatpush.msra.mxu0 %v1517
    %1534 = vmatpush.msra.mxu0 %v1516
    %1535 = vmatpush.msra.mxu0 %v1515
    %1536 = vmatpush.msra.mxu0 %v1514
    %1537 = vmatpush.msra.mxu0 %v1513
    %1538 = vmatpush.msra.mxu0 %v1512
    %1539 = vmatpush.msra.mxu0 %v1511
    %1540 = vmatpush.msra.mxu0 %v1510
    %1541 = vmatpush.msra.mxu0 %v1509
    %1542 = vmatmul.f32.gmra.mxu0 %v1506
    %v1543 = vpop.f32.mrf.mxu0
    %v1544 = vadd.f32 %v1525, %v1543
    %1545 = vmatmul.f32.gmra.mxu0 %v1507
    %v1546 = vpop.f32.mrf.mxu0
    %v1547 = vadd.f32 %v1525, %v1546
    %1548 = vdwg.mxu0
    %v1549 = vadd.f32 %v1469, %v1544
    %v1550 = vadd.f32 %v1470, %v1547
    %v1551 = vsel %vm114, %v1549, 0.0
    %1552 = vadd.xlane.f32.xlu0 %v1551
    %v1553 = vpop.xlane.xlu0 %1552
    %v1554 = vsel %vm114, %v1550, 0.0
    %1555 = vadd.xlane.f32.xlu0 %v1554
    %v1556 = vpop.xlane.xlu0 %1555
    %v1557 = vmul.f32 %v1553, %v685
    %v1558 = vmul.f32 %v1556, %v685
    %v1559 = vsub.f32 %v1549, %v1557
    %v1560 = vsub.f32 %v1550, %v1558
    %v1561 = vmul.f32 %v1559, %v1559
    %v1562 = vmul.f32 %v1560, %v1560
    %v1563 = vsel %vm114, %v1561, 0.0
    %1564 = vadd.xlane.f32.xlu0 %v1563
    %v1565 = vpop.xlane.xlu0 %1564
    %v1566 = vsel %vm114, %v1562, 0.0
    %1567 = vadd.xlane.f32.xlu0 %v1566
    %v1568 = vpop.xlane.xlu0 %1567
    %v1569 = vmul.f32 %v1565, %v685
    %v1570 = vmul.f32 %v1568, %v685
    %v1571 = vadd.f32 %v1569, 1e-05
    %v1572 = vadd.f32 %v1570, 1e-05
    %v1573 = vrsqrt.pop %v1571
    %v1574 = vmul.f32 %v1573, %v1571
    %v1575 = vmul.f32 %v1574, %v1573
    %v1576 = vmul.f32 0.5, %v1575
    %v1577 = vsub.f32 1.5, %v1576
    %v1578 = vmul.f32 %v1573, %v1577
    %vm1579 = vweird.f32 %v1571
    %vm1580 = vweird.f32 %v1573
    %vm1581 = vmor %vm1579, %vm1580
    %v1582 = vsel %vm1581, %v1573, %v1578
    %v1583 = vrsqrt.pop %v1572
    %v1584 = vmul.f32 %v1583, %v1572
    %v1585 = vmul.f32 %v1584, %v1583
    %v1586 = vmul.f32 0.5, %v1585
    %v1587 = vsub.f32 1.5, %v1586
    %v1588 = vmul.f32 %v1583, %v1587
    %vm1589 = vweird.f32 %v1572
    %vm1590 = vweird.f32 %v1583
    %vm1591 = vmor %vm1589, %vm1590
    %v1592 = vsel %vm1591, %v1583, %v1588
    %v1593 = vmul.f32 %v1559, %v1582
    %v1594 = vmul.f32 %v1560, %v1592
    %v1595 = vperm.slane %v107, 1
    %v1596 = vmul.f32 %v1593, %v1595
    %v1597 = vmul.f32 %v1594, %v1595
    %v1598 = vperm.slane %v108, 1
    %v1599 = vadd.f32 %v1596, %v1598
    %v1600 = vadd.f32 %v1597, %v1598
    %v1601 = vld [vmem:[%s16] sm:$0xff]
    %v1602 = vld [vmem:[%s16 + $0x8] sm:$0xff]
    %v1603 = vld [vmem:[%s16 + $0x10] sm:$0xff]
    %v1604 = vld [vmem:[%s16 + $0x18] sm:$0xff]
    %v1605 = vld [vmem:[%s16 + $0x20] sm:$0xff]
    %v1606 = vld [vmem:[%s16 + $0x28] sm:$0xff]
    %v1607 = vld [vmem:[%s16 + $0x30] sm:$0xff]
    %v1608 = vld [vmem:[%s16 + $0x38] sm:$0xff]
    %v1609 = vld [vmem:[%s16 + $0x40] sm:$0xff]
    %v1610 = vld [vmem:[%s16 + $0x48] sm:$0xff]
    %v1611 = vld [vmem:[%s16 + $0x50] sm:$0xff]
    %v1612 = vld [vmem:[%s16 + $0x58] sm:$0xff]
    %v1613 = vld [vmem:[%s16 + $0x60] sm:$0xff]
    %v1614 = vld [vmem:[%s16 + $0x68] sm:$0xff]
    %v1615 = vld [vmem:[%s16 + $0x70] sm:$0xff]
    %v1616 = vld [vmem:[%s16 + $0x78] sm:$0xff]
    %v1617 = vld [vmem:[%s16 + $0x80] sm:$0xff]
    %v1618 = vld [vmem:[%s16 + $0x88] sm:$0xff]
    %v1619 = vld [vmem:[%s16 + $0x90] sm:$0xff]
    %v1620 = vld [vmem:[%s16 + $0x98] sm:$0xff]
    %v1621 = vld [vmem:[%s16 + $0xa0] sm:$0xff]
    %v1622 = vld [vmem:[%s16 + $0xa8] sm:$0xff]
    %v1623 = vld [vmem:[%s16 + $0xb0] sm:$0xff]
    %v1624 = vld [vmem:[%s16 + $0xb8] sm:$0xff]
    %v1625 = vld [vmem:[%s16 + $0xc0] sm:$0xff]
    %v1626 = vld [vmem:[%s16 + $0xc8] sm:$0xff]
    %v1627 = vld [vmem:[%s16 + $0xd0] sm:$0xff]
    %v1628 = vld [vmem:[%s16 + $0xd8] sm:$0xff]
    %v1629 = vld [vmem:[%s16 + $0xe0] sm:$0xff]
    %v1630 = vld [vmem:[%s16 + $0xe8] sm:$0xff]
    %v1631 = vld [vmem:[%s16 + $0xf0] sm:$0xff]
    %v1632 = vld [vmem:[%s16 + $0xf8] sm:$0xff]
    %v1633 = vld [vmem:[%s17] sm:$0x1]
    %v1635 = vsel %vm114, %v1599, 0
    %1637 = vmatpush.msra.mxu0 0.0
    %1638 = vmatpush.msra.mxu0 0.0
    %1639 = vmatpush.msra.mxu0 0.0
    %1640 = vmatpush.msra.mxu0 0.0
    %1641 = vmatpush.msra.mxu0 0.0
    %1642 = vmatpush.msra.mxu0 0.0
    %1643 = vmatpush.msra.mxu0 0.0
    %1644 = vmatpush.msra.mxu0 0.0
    %1645 = vmatpush.msra.mxu0 0.0
    %1646 = vmatpush.msra.mxu0 0.0
    %1647 = vmatpush.msra.mxu0 0.0
    %1648 = vmatpush.msra.mxu0 0.0
    %1649 = vmatpush.msra.mxu0 %v1604
    %1650 = vmatpush.msra.mxu0 %v1603
    %1651 = vmatpush.msra.mxu0 %v1602
    %1652 = vmatpush.msra.mxu0 %v1601
    %1653 = vmatmul.f32.gmra.mxu0 %v1635
    %v1654 = vpop.f32.mrf.mxu0
    %v1655 = vadd.f32 0.0, %v1654
    %1656 = vdwg.mxu0
    %v1657 = vadd.f32 %v1633, %v1655
    %v1658 = vrot.slane %v1599, 1
    %v1659 = vsel %vm114, %v1658, 0
    %1661 = vmatpush.msra.mxu0 0.0
    %1662 = vmatpush.msra.mxu0 0.0
    %1663 = vmatpush.msra.mxu0 0.0
    %1664 = vmatpush.msra.mxu0 0.0
    %1665 = vmatpush.msra.mxu0 0.0
    %1666 = vmatpush.msra.mxu0 0.0
    %1667 = vmatpush.msra.mxu0 0.0
    %1668 = vmatpush.msra.mxu0 0.0
    %1669 = vmatpush.msra.mxu0 0.0
    %1670 = vmatpush.msra.mxu0 0.0
    %1671 = vmatpush.msra.mxu0 0.0
    %1672 = vmatpush.msra.mxu0 0.0
    %1673 = vmatpush.msra.mxu0 %v1608
    %1674 = vmatpush.msra.mxu0 %v1607
    %1675 = vmatpush.msra.mxu0 %v1606
    %1676 = vmatpush.msra.mxu0 %v1605
    %1677 = vmatmul.f32.gmra.mxu0 %v1659
    %v1678 = vpop.f32.mrf.mxu0
    %v1679 = vadd.f32 0.0, %v1678
    %1680 = vdwg.mxu0
    %v1681 = vadd.f32 %v1657, %v1679
    %v1682 = vrot.slane %v1599, 2
    %v1683 = vsel %vm114, %v1682, 0
    %1685 = vmatpush.msra.mxu0 0.0
    %1686 = vmatpush.msra.mxu0 0.0
    %1687 = vmatpush.msra.mxu0 0.0
    %1688 = vmatpush.msra.mxu0 0.0
    %1689 = vmatpush.msra.mxu0 0.0
    %1690 = vmatpush.msra.mxu0 0.0
    %1691 = vmatpush.msra.mxu0 0.0
    %1692 = vmatpush.msra.mxu0 0.0
    %1693 = vmatpush.msra.mxu0 0.0
    %1694 = vmatpush.msra.mxu0 0.0
    %1695 = vmatpush.msra.mxu0 0.0
    %1696 = vmatpush.msra.mxu0 0.0
    %1697 = vmatpush.msra.mxu0 %v1612
    %1698 = vmatpush.msra.mxu0 %v1611
    %1699 = vmatpush.msra.mxu0 %v1610
    %1700 = vmatpush.msra.mxu0 %v1609
    %1701 = vmatmul.f32.gmra.mxu0 %v1683
    %v1702 = vpop.f32.mrf.mxu0
    %v1703 = vadd.f32 0.0, %v1702
    %1704 = vdwg.mxu0
    %v1705 = vadd.f32 %v1681, %v1703
    %v1706 = vrot.slane %v1599, 3
    %v1707 = vsel %vm114, %v1706, 0
    %1709 = vmatpush.msra.mxu0 0.0
    %1710 = vmatpush.msra.mxu0 0.0
    %1711 = vmatpush.msra.mxu0 0.0
    %1712 = vmatpush.msra.mxu0 0.0
    %1713 = vmatpush.msra.mxu0 0.0
    %1714 = vmatpush.msra.mxu0 0.0
    %1715 = vmatpush.msra.mxu0 0.0
    %1716 = vmatpush.msra.mxu0 0.0
    %1717 = vmatpush.msra.mxu0 0.0
    %1718 = vmatpush.msra.mxu0 0.0
    %1719 = vmatpush.msra.mxu0 0.0
    %1720 = vmatpush.msra.mxu0 0.0
    %1721 = vmatpush.msra.mxu0 %v1616
    %1722 = vmatpush.msra.mxu0 %v1615
    %1723 = vmatpush.msra.mxu0 %v1614
    %1724 = vmatpush.msra.mxu0 %v1613
    %1725 = vmatmul.f32.gmra.mxu0 %v1707
    %v1726 = vpop.f32.mrf.mxu0
    %v1727 = vadd.f32 0.0, %v1726
    %1728 = vdwg.mxu0
    %v1729 = vadd.f32 %v1705, %v1727
    %v1730 = vrot.slane %v1599, 4
    %v1731 = vsel %vm114, %v1730, 0
    %1733 = vmatpush.msra.mxu0 0.0
    %1734 = vmatpush.msra.mxu0 0.0
    %1735 = vmatpush.msra.mxu0 0.0
    %1736 = vmatpush.msra.mxu0 0.0
    %1737 = vmatpush.msra.mxu0 0.0
    %1738 = vmatpush.msra.mxu0 0.0
    %1739 = vmatpush.msra.mxu0 0.0
    %1740 = vmatpush.msra.mxu0 0.0
    %1741 = vmatpush.msra.mxu0 0.0
    %1742 = vmatpush.msra.mxu0 0.0
    %1743 = vmatpush.msra.mxu0 0.0
    %1744 = vmatpush.msra.mxu0 0.0
    %1745 = vmatpush.msra.mxu0 %v1620
    %1746 = vmatpush.msra.mxu0 %v1619
    %1747 = vmatpush.msra.mxu0 %v1618
    %1748 = vmatpush.msra.mxu0 %v1617
    %1749 = vmatmul.f32.gmra.mxu0 %v1731
    %v1750 = vpop.f32.mrf.mxu0
    %v1751 = vadd.f32 0.0, %v1750
    %1752 = vdwg.mxu0
    %v1753 = vadd.f32 %v1729, %v1751
    %v1754 = vrot.slane %v1599, 5
    %v1755 = vsel %vm114, %v1754, 0
    %1757 = vmatpush.msra.mxu0 0.0
    %1758 = vmatpush.msra.mxu0 0.0
    %1759 = vmatpush.msra.mxu0 0.0
    %1760 = vmatpush.msra.mxu0 0.0
    %1761 = vmatpush.msra.mxu0 0.0
    %1762 = vmatpush.msra.mxu0 0.0
    %1763 = vmatpush.msra.mxu0 0.0
    %1764 = vmatpush.msra.mxu0 0.0
    %1765 = vmatpush.msra.mxu0 0.0
    %1766 = vmatpush.msra.mxu0 0.0
    %1767 = vmatpush.msra.mxu0 0.0
    %1768 = vmatpush.msra.mxu0 0.0
    %1769 = vmatpush.msra.mxu0 %v1624
    %1770 = vmatpush.msra.mxu0 %v1623
    %1771 = vmatpush.msra.mxu0 %v1622
    %1772 = vmatpush.msra.mxu0 %v1621
    %1773 = vmatmul.f32.gmra.mxu0 %v1755
    %v1774 = vpop.f32.mrf.mxu0
    %v1775 = vadd.f32 0.0, %v1774
    %1776 = vdwg.mxu0
    %v1777 = vadd.f32 %v1753, %v1775
    %v1778 = vrot.slane %v1599, 6
    %v1779 = vsel %vm114, %v1778, 0
    %1781 = vmatpush.msra.mxu0 0.0
    %1782 = vmatpush.msra.mxu0 0.0
    %1783 = vmatpush.msra.mxu0 0.0
    %1784 = vmatpush.msra.mxu0 0.0
    %1785 = vmatpush.msra.mxu0 0.0
    %1786 = vmatpush.msra.mxu0 0.0
    %1787 = vmatpush.msra.mxu0 0.0
    %1788 = vmatpush.msra.mxu0 0.0
    %1789 = vmatpush.msra.mxu0 0.0
    %1790 = vmatpush.msra.mxu0 0.0
    %1791 = vmatpush.msra.mxu0 0.0
    %1792 = vmatpush.msra.mxu0 0.0
    %1793 = vmatpush.msra.mxu0 %v1628
    %1794 = vmatpush.msra.mxu0 %v1627
    %1795 = vmatpush.msra.mxu0 %v1626
    %1796 = vmatpush.msra.mxu0 %v1625
    %1797 = vmatmul.f32.gmra.mxu0 %v1779
    %v1798 = vpop.f32.mrf.mxu0
    %v1799 = vadd.f32 0.0, %v1798
    %1800 = vdwg.mxu0
    %v1801 = vadd.f32 %v1777, %v1799
    %v1802 = vrot.slane %v1599, 7
    %v1803 = vsel %vm114, %v1802, 0
    %1805 = vmatpush.msra.mxu0 0.0
    %1806 = vmatpush.msra.mxu0 0.0
    %1807 = vmatpush.msra.mxu0 0.0
    %1808 = vmatpush.msra.mxu0 0.0
    %1809 = vmatpush.msra.mxu0 0.0
    %1810 = vmatpush.msra.mxu0 0.0
    %1811 = vmatpush.msra.mxu0 0.0
    %1812 = vmatpush.msra.mxu0 0.0
    %1813 = vmatpush.msra.mxu0 0.0
    %1814 = vmatpush.msra.mxu0 0.0
    %1815 = vmatpush.msra.mxu0 0.0
    %1816 = vmatpush.msra.mxu0 0.0
    %1817 = vmatpush.msra.mxu0 %v1632
    %1818 = vmatpush.msra.mxu0 %v1631
    %1819 = vmatpush.msra.mxu0 %v1630
    %1820 = vmatpush.msra.mxu0 %v1629
    %1821 = vmatmul.f32.gmra.mxu0 %v1803
    %v1822 = vpop.f32.mrf.mxu0
    %v1823 = vadd.f32 0.0, %v1822
    %1824 = vdwg.mxu0
    %v1825 = vadd.f32 %v1801, %v1823
    %vm1826 = vcmask 32768
    %1827 = vst.msk [vmem:[#allocation2] sm:$0x1] %vm1826, %v1825
    %v1829 = vsel %vm114, %v1600, 0
    %1831 = vmatpush.msra.mxu0 0.0
    %1832 = vmatpush.msra.mxu0 0.0
    %1833 = vmatpush.msra.mxu0 0.0
    %1834 = vmatpush.msra.mxu0 0.0
    %1835 = vmatpush.msra.mxu0 0.0
    %1836 = vmatpush.msra.mxu0 0.0
    %1837 = vmatpush.msra.mxu0 0.0
    %1838 = vmatpush.msra.mxu0 0.0
    %1839 = vmatpush.msra.mxu0 0.0
    %1840 = vmatpush.msra.mxu0 0.0
    %1841 = vmatpush.msra.mxu0 0.0
    %1842 = vmatpush.msra.mxu0 0.0
    %1843 = vmatpush.msra.mxu0 %v1604
    %1844 = vmatpush.msra.mxu0 %v1603
    %1845 = vmatpush.msra.mxu0 %v1602
    %1846 = vmatpush.msra.mxu0 %v1601
    %1847 = vmatmul.f32.gmra.mxu0 %v1829
    %v1848 = vpop.f32.mrf.mxu0
    %v1849 = vadd.f32 0.0, %v1848
    %1850 = vdwg.mxu0
    %v1851 = vadd.f32 %v1633, %v1849
    %v1852 = vrot.slane %v1600, 1
    %v1853 = vsel %vm114, %v1852, 0
    %1855 = vmatpush.msra.mxu0 0.0
    %1856 = vmatpush.msra.mxu0 0.0
    %1857 = vmatpush.msra.mxu0 0.0
    %1858 = vmatpush.msra.mxu0 0.0
    %1859 = vmatpush.msra.mxu0 0.0
    %1860 = vmatpush.msra.mxu0 0.0
    %1861 = vmatpush.msra.mxu0 0.0
    %1862 = vmatpush.msra.mxu0 0.0
    %1863 = vmatpush.msra.mxu0 0.0
    %1864 = vmatpush.msra.mxu0 0.0
    %1865 = vmatpush.msra.mxu0 0.0
    %1866 = vmatpush.msra.mxu0 0.0
    %1867 = vmatpush.msra.mxu0 %v1608
    %1868 = vmatpush.msra.mxu0 %v1607
    %1869 = vmatpush.msra.mxu0 %v1606
    %1870 = vmatpush.msra.mxu0 %v1605
    %1871 = vmatmul.f32.gmra.mxu0 %v1853
    %v1872 = vpop.f32.mrf.mxu0
    %v1873 = vadd.f32 0.0, %v1872
    %1874 = vdwg.mxu0
    %v1875 = vadd.f32 %v1851, %v1873
    %v1876 = vrot.slane %v1600, 2
    %v1877 = vsel %vm114, %v1876, 0
    %1879 = vmatpush.msra.mxu0 0.0
    %1880 = vmatpush.msra.mxu0 0.0
    %1881 = vmatpush.msra.mxu0 0.0
    %1882 = vmatpush.msra.mxu0 0.0
    %1883 = vmatpush.msra.mxu0 0.0
    %1884 = vmatpush.msra.mxu0 0.0
    %1885 = vmatpush.msra.mxu0 0.0
    %1886 = vmatpush.msra.mxu0 0.0
    %1887 = vmatpush.msra.mxu0 0.0
    %1888 = vmatpush.msra.mxu0 0.0
    %1889 = vmatpush.msra.mxu0 0.0
    %1890 = vmatpush.msra.mxu0 0.0
    %1891 = vmatpush.msra.mxu0 %v1612
    %1892 = vmatpush.msra.mxu0 %v1611
    %1893 = vmatpush.msra.mxu0 %v1610
    %1894 = vmatpush.msra.mxu0 %v1609
    %1895 = vmatmul.f32.gmra.mxu0 %v1877
    %v1896 = vpop.f32.mrf.mxu0
    %v1897 = vadd.f32 0.0, %v1896
    %1898 = vdwg.mxu0
    %v1899 = vadd.f32 %v1875, %v1897
    %v1900 = vrot.slane %v1600, 3
    %v1901 = vsel %vm114, %v1900, 0
    %1903 = vmatpush.msra.mxu0 0.0
    %1904 = vmatpush.msra.mxu0 0.0
    %1905 = vmatpush.msra.mxu0 0.0
    %1906 = vmatpush.msra.mxu0 0.0
    %1907 = vmatpush.msra.mxu0 0.0
    %1908 = vmatpush.msra.mxu0 0.0
    %1909 = vmatpush.msra.mxu0 0.0
    %1910 = vmatpush.msra.mxu0 0.0
    %1911 = vmatpush.msra.mxu0 0.0
    %1912 = vmatpush.msra.mxu0 0.0
    %1913 = vmatpush.msra.mxu0 0.0
    %1914 = vmatpush.msra.mxu0 0.0
    %1915 = vmatpush.msra.mxu0 %v1616
    %1916 = vmatpush.msra.mxu0 %v1615
    %1917 = vmatpush.msra.mxu0 %v1614
    %1918 = vmatpush.msra.mxu0 %v1613
    %1919 = vmatmul.f32.gmra.mxu0 %v1901
    %v1920 = vpop.f32.mrf.mxu0
    %v1921 = vadd.f32 0.0, %v1920
    %1922 = vdwg.mxu0
    %v1923 = vadd.f32 %v1899, %v1921
    %v1924 = vrot.slane %v1600, 4
    %v1925 = vsel %vm114, %v1924, 0
    %1927 = vmatpush.msra.mxu0 0.0
    %1928 = vmatpush.msra.mxu0 0.0
    %1929 = vmatpush.msra.mxu0 0.0
    %1930 = vmatpush.msra.mxu0 0.0
    %1931 = vmatpush.msra.mxu0 0.0
    %1932 = vmatpush.msra.mxu0 0.0
    %1933 = vmatpush.msra.mxu0 0.0
    %1934 = vmatpush.msra.mxu0 0.0
    %1935 = vmatpush.msra.mxu0 0.0
    %1936 = vmatpush.msra.mxu0 0.0
    %1937 = vmatpush.msra.mxu0 0.0
    %1938 = vmatpush.msra.mxu0 0.0
    %1939 = vmatpush.msra.mxu0 %v1620
    %1940 = vmatpush.msra.mxu0 %v1619
    %1941 = vmatpush.msra.mxu0 %v1618
    %1942 = vmatpush.msra.mxu0 %v1617
    %1943 = vmatmul.f32.gmra.mxu0 %v1925
    %v1944 = vpop.f32.mrf.mxu0
    %v1945 = vadd.f32 0.0, %v1944
    %1946 = vdwg.mxu0
    %v1947 = vadd.f32 %v1923, %v1945
    %v1948 = vrot.slane %v1600, 5
    %v1949 = vsel %vm114, %v1948, 0
    %1951 = vmatpush.msra.mxu0 0.0
    %1952 = vmatpush.msra.mxu0 0.0
    %1953 = vmatpush.msra.mxu0 0.0
    %1954 = vmatpush.msra.mxu0 0.0
    %1955 = vmatpush.msra.mxu0 0.0
    %1956 = vmatpush.msra.mxu0 0.0
    %1957 = vmatpush.msra.mxu0 0.0
    %1958 = vmatpush.msra.mxu0 0.0
    %1959 = vmatpush.msra.mxu0 0.0
    %1960 = vmatpush.msra.mxu0 0.0
    %1961 = vmatpush.msra.mxu0 0.0
    %1962 = vmatpush.msra.mxu0 0.0
    %1963 = vmatpush.msra.mxu0 %v1624
    %1964 = vmatpush.msra.mxu0 %v1623
    %1965 = vmatpush.msra.mxu0 %v1622
    %1966 = vmatpush.msra.mxu0 %v1621
    %1967 = vmatmul.f32.gmra.mxu0 %v1949
    %v1968 = vpop.f32.mrf.mxu0
    %v1969 = vadd.f32 0.0, %v1968
    %1970 = vdwg.mxu0
    %v1971 = vadd.f32 %v1947, %v1969
    %v1972 = vrot.slane %v1600, 6
    %v1973 = vsel %vm114, %v1972, 0
    %1975 = vmatpush.msra.mxu0 0.0
    %1976 = vmatpush.msra.mxu0 0.0
    %1977 = vmatpush.msra.mxu0 0.0
    %1978 = vmatpush.msra.mxu0 0.0
    %1979 = vmatpush.msra.mxu0 0.0
    %1980 = vmatpush.msra.mxu0 0.0
    %1981 = vmatpush.msra.mxu0 0.0
    %1982 = vmatpush.msra.mxu0 0.0
    %1983 = vmatpush.msra.mxu0 0.0
    %1984 = vmatpush.msra.mxu0 0.0
    %1985 = vmatpush.msra.mxu0 0.0
    %1986 = vmatpush.msra.mxu0 0.0
    %1987 = vmatpush.msra.mxu0 %v1628
    %1988 = vmatpush.msra.mxu0 %v1627
    %1989 = vmatpush.msra.mxu0 %v1626
    %1990 = vmatpush.msra.mxu0 %v1625
    %1991 = vmatmul.f32.gmra.mxu0 %v1973
    %v1992 = vpop.f32.mrf.mxu0
    %v1993 = vadd.f32 0.0, %v1992
    %1994 = vdwg.mxu0
    %v1995 = vadd.f32 %v1971, %v1993
    %v1996 = vrot.slane %v1600, 7
    %v1997 = vsel %vm114, %v1996, 0
    %1999 = vmatpush.msra.mxu0 0.0
    %2000 = vmatpush.msra.mxu0 0.0
    %2001 = vmatpush.msra.mxu0 0.0
    %2002 = vmatpush.msra.mxu0 0.0
    %2003 = vmatpush.msra.mxu0 0.0
    %2004 = vmatpush.msra.mxu0 0.0
    %2005 = vmatpush.msra.mxu0 0.0
    %2006 = vmatpush.msra.mxu0 0.0
    %2007 = vmatpush.msra.mxu0 0.0
    %2008 = vmatpush.msra.mxu0 0.0
    %2009 = vmatpush.msra.mxu0 0.0
    %2010 = vmatpush.msra.mxu0 0.0
    %2011 = vmatpush.msra.mxu0 %v1632
    %2012 = vmatpush.msra.mxu0 %v1631
    %2013 = vmatpush.msra.mxu0 %v1630
    %2014 = vmatpush.msra.mxu0 %v1629
    %2015 = vmatmul.f32.gmra.mxu0 %v1997
    %v2016 = vpop.f32.mrf.mxu0
    %v2017 = vadd.f32 0.0, %v2016
    %2018 = vdwg.mxu0
    %v2019 = vadd.f32 %v1995, %v2017
    %2020 = vst.msk [vmem:[#allocation2 + $0x1] sm:$0x1] %vm1826, %v2019
    // Predicated region
    $region74: #{transformer_forward.1} parent=1 // pred_check
      _
    $region75: #{transformer_forward.1} parent=1 // pred_check_branch
      %2022 = sbr.rel (0) target = $region77
    $region76: #{transformer_forward.1} parent=1 // pred_region
      %2024 = vsyncadd [#allocation3], 0
      %s2026 = sshll.u32 [#allocation2], 4
      %s2027 = int_to_ptr.vmem [resolvable:$true] %s2026
      %s2028 = sshll.u32 %s18, 4
      %s2029 = int_to_ptr.hbm [resolvable:$true] %s2028
      %2031 = dma.vmem_to_hbm [thread:$0]  %s2027, 32, %s2029, [#allocation3]
    $region77: #{transformer_forward.1} parent=1 // pred_fallthru
      _
    // Predicated region
    $region78: #{transformer_forward.1} parent=1 // pred_check
      _
    $region79: #{transformer_forward.1} parent=1 // pred_check_branch
      %2033 = sbr.rel (0) target = $region81
    $region80: #{transformer_forward.1} parent=1 // pred_region
      %2035 = dma.done [#allocation3], 32
    $region81: #{transformer_forward.1} parent=1 // pred_fallthru
      _
    %2036 = vsyncpa [#allocation3], 1

</llo_original>
